<compile_context>
chip_gen: v6e
topology: v6e:2x2x1
jax: 0.10.0
libtpu: 0.0.40
codegen_flags: <defaults>
</compile_context>

<pallas_src>
import math

import jax
import jax.numpy as jnp
from jax import lax
from jax.experimental import pallas as pl
from jax.experimental.pallas import tpu as pltpu

VMEM_SPEC = pl.BlockSpec(memory_space=pltpu.MemorySpace.VMEM)
LANE = 128
SUBLANE = 8


def _round_up(n, m):
    return ((n + m - 1) // m) * m


# ----------------------------------------------------------------------------
# Fused Pallas kernel: 3x LSTM recurrence + tanh + linear heads + ww mix
# ----------------------------------------------------------------------------
def decoder_kernel(xw_ref, hc0_ref, wslab_ref, voutb_ref, out_ref,
                   gproj_ref, hseq_ref):
    """Fused DecoderLSTM forward.

    xw_ref    : (T*Bp, 5)      time-major, batch-padded; cols 0:2 = x, 2:5 = ww
    hc0_ref   : (Bp, 2*Hp)     cols 0:Hp = h0 (zero-padded), Hp:2Hp = c0
    wslab_ref : (Hp+3, 4*Hp)   rows 0:Hp = block-diag Whh, rows Hp:Hp+2 = Wih,
                               row Hp+2 = b_ih + b_hh   (gate layout [i|f|o|g])
    voutb_ref : (Hp+1, 3)      rows 0:Hp = block-diag L_out3/4/5, row Hp = biases
    out_ref   : (T*Bp, 1)      ww-weighted head mix (time-major, batch padded)
    gproj_ref : scratch (T*Bp, 4*Hp)   hoisted x @ Wih + b
    hseq_ref  : scratch (T*Bp, Hp)     hidden sequence of all three LSTMs
    """
    TB = xw_ref.shape[0]
    Bp, Hp2 = hc0_ref.shape
    Hp = Hp2 // 2
    T = TB // Bp

    # --- Prologue: hoisted input projection + bias on the VPU (K=2 on the MXU
    #     would be ~98% wasted and would sit in front of step 0's matmul).
    wih0 = wslab_ref[Hp:Hp + 1, :]          # (1, 4Hp)
    wih1 = wslab_ref[Hp + 1:Hp + 2, :]      # (1, 4Hp)
    bias = wslab_ref[Hp + 2:Hp + 3, :]      # (1, 4Hp)
    gproj_ref[...] = (xw_ref[:, 0:1] * wih0 + xw_ref[:, 1:2] * wih1 + bias)

    # --- Recurrence. T is small & static -> fully unrolled straight-line code.
    #     Whh is read from the ref inside the loop (weight-stationary; no long
    #     live range across the unrolled steps).
    h = hc0_ref[:, 0:Hp]
    c = hc0_ref[:, Hp:2 * Hp]
    for t in range(T):
        row = t * Bp                                           # 8-sublane aligned
        gates = gproj_ref[row:row + Bp, :] + jnp.dot(
            h, wslab_ref[0:Hp, :], preferred_element_type=jnp.float32)
        sig = jax.nn.sigmoid(gates[:, 0:3 * Hp])               # i|f|o, one sweep
        i_g = sig[:, 0:Hp]                                     # vreg-aligned
        f_g = sig[:, Hp:2 * Hp]
        o_g = sig[:, 2 * Hp:3 * Hp]
        g_g = jnp.tanh(gates[:, 3 * Hp:4 * Hp])
        c = f_g * c + i_g * g_g
        h = o_g * jnp.tanh(c)
        hseq_ref[row:row + Bp, :] = h

    # --- Epilogue (off the serial critical path): output heads + ww mix.
    th = jnp.tanh(hseq_ref[...])                               # (T*Bp, Hp)
    proj = jnp.dot(th, voutb_ref[0:Hp, :],
                   preferred_element_type=jnp.float32) + voutb_ref[Hp:Hp + 1, :]
    out_ref[...] = jnp.sum(proj * xw_ref[:, 2:5], axis=-1, keepdims=True)


# ----------------------------------------------------------------------------
# Parameter setup (mirrors PyTorch inits) + one-time fused-weight preparation
# ----------------------------------------------------------------------------
def init_params(key, cfg):
    H = cfg['hidden_dim']
    keys = iter(jax.random.split(key, 32))

    def u(k, shape, bound):
        return jax.random.uniform(k, shape, jnp.float32, -bound, bound)

    def lstm(in_dim):
        bnd = 1.0 / math.sqrt(H)
        return (u(next(keys), (4 * H, in_dim), bnd),   # w_ih
                u(next(keys), (4 * H, H), bnd),        # w_hh
                u(next(keys), (4 * H,), bnd),          # b_ih
                u(next(keys), (4 * H,), bnd))          # b_hh

    def linear(out_f, in_f):
        bnd = 1.0 / math.sqrt(in_f)
        return (u(next(keys), (out_f, in_f), bnd), u(next(keys), (out_f,), bnd))

    return {
        'lstm0': lstm(2), 'lstm1': lstm(2), 'lstm2': lstm(2),
        'L_out3': linear(1, H), 'L_out4': linear(1, H), 'L_out5': linear(1, H),
    }


def prepare_fused_params(params, cfg):
    """Stack the 3 LSTMs / 3 heads into lane-aligned padded slabs (run once)."""
    H = cfg['hidden_dim']
    H3 = 3 * H
    Hp = _round_up(max(H3, LANE), LANE)      # padded, 128-lane-aligned gate width
    G = 4 * Hp

    # PyTorch gate rows are [i, f, g, o]; fused order is [i, f, o, g] so one
    # sigmoid covers the first 3*Hp lanes and one tanh the last Hp.
    gate_rows = [(0, H), (H, 2 * H), (3 * H, 4 * H), (2 * H, 3 * H)]
    names = ('lstm0', 'lstm1', 'lstm2')

    wih = jnp.zeros((2, G), jnp.float32)
    b = jnp.zeros((1, G), jnp.float32)
    whh = jnp.zeros((Hp, G), jnp.float32)
    for p, (lo, hi) in enumerate(gate_rows):
        for l, name in enumerate(names):
            w_ih, w_hh, b_ih, b_hh = params[name]
            col = p * Hp + l * H
            wih = wih.at[:, col:col + H].set(jnp.transpose(w_ih[lo:hi]))
            b = b.at[0, col:col + H].set((b_ih + b_hh)[lo:hi])
            whh = whh.at[l * H:(l + 1) * H, col:col + H].set(
                jnp.transpose(w_hh[lo:hi]))
    wslab = jnp.concatenate([whh, wih, b], axis=0)             # (Hp+3, 4Hp)

    vout = jnp.zeros((Hp, 3), jnp.float32)
    bout = jnp.zeros((1, 3), jnp.float32)
    for l, name in enumerate(('L_out3', 'L_out4', 'L_out5')):
        w_o, b_o = params[name]
        vout = vout.at[l * H:(l + 1) * H, l].set(w_o[0])
        bout = bout.at[0, l].set(b_o[0])
    voutb = jnp.concatenate([vout, bout], axis=0)              # (Hp+1, 3)

    return dict(wslab=wslab, voutb=voutb)


# ----------------------------------------------------------------------------
# Forward pass (mirrors DecoderLSTM.forward) — a single pallas_call
# ----------------------------------------------------------------------------
def decoder_lstm_forward(x, encoder_h, encoder_c, ww, fused):
    """x: (B, T, 2); encoder_h/c: 3 arrays of (layer_dim, B, H); ww: (B, T, 3)."""
    B, T, _ = x.shape
    Hp = fused['wslab'].shape[0] - 3
    Bp = _round_up(max(B, SUBLANE), SUBLANE)

    # TODO(synk): layer_dim > 1 (stacked LSTM layers + inter-layer dropout=0.1)
    # is not implemented; with layer_dim = 1 the dropout argument is a no-op.
    h0 = jnp.concatenate([h[0] for h in encoder_h], axis=-1)    # (B, 3H)
    c0 = jnp.concatenate([c[0] for c in encoder_c], axis=-1)    # (B, 3H)
    H3 = h0.shape[1]
    hc0 = jnp.zeros((Bp, 2 * Hp), jnp.float32)
    hc0 = hc0.at[:B, 0:H3].set(h0).at[:B, Hp:Hp + H3].set(c0)

    # All relayouts (time-major transpose, batch padding, flatten, x|ww pack)
    # happen here in XLA, outside the latency-critical kernel.
    x_tm = jnp.transpose(x, (1, 0, 2))                          # (T, B, 2)
    ww_tm = jnp.transpose(ww, (1, 0, 2))                        # (T, B, 3)
    xw = jnp.zeros((T, Bp, 5), jnp.float32)
    xw = xw.at[:, :B, 0:2].set(x_tm).at[:, :B, 2:5].set(ww_tm)
    xw = xw.reshape(T * Bp, 5)

    out_flat = pl.pallas_call(
        decoder_kernel,
        out_shape=jax.ShapeDtypeStruct((T * Bp, 1), jnp.float32),
        in_specs=[VMEM_SPEC] * 4,
        out_specs=VMEM_SPEC,
        scratch_shapes=[pltpu.VMEM((T * Bp, 4 * Hp), jnp.float32),  # gproj
                        pltpu.VMEM((T * Bp, Hp), jnp.float32)],     # hidden seq
    )(xw, hc0, fused['wslab'], fused['voutb'])

    # (T*Bp, 1) -> (T, Bp) -> strip batch pad -> (B, T)
    return jnp.transpose(out_flat.reshape(T, Bp)[:, :B])


# ----------------------------------------------------------------------------
# Pure-JAX reference (straight transcription of the PyTorch module)
# ----------------------------------------------------------------------------
def _lstm_seq_ref(x, h0, c0, w_ih, w_hh, b_ih, b_hh):
    H = h0.shape[1]

    def step(carry, x_t):
        h, c = carry
        gates = x_t @ w_ih.T + h @ w_hh.T + b_ih + b_hh
        i = jax.nn.sigmoid(gates[:, 0:H])
        f = jax.nn.sigmoid(gates[:, H:2 * H])
        g = jnp.tanh(gates[:, 2 * H:3 * H])
        o = jax.nn.sigmoid(gates[:, 3 * H:4 * H])
        c = f * c + i * g
        h = o * jnp.tanh(c)
        return (h, c), h

    _, hs = lax.scan(step, (h0, c0), jnp.transpose(x, (1, 0, 2)))
    return jnp.transpose(hs, (1, 0, 2))                          # (B, T, H)


def decoder_lstm_reference(x, encoder_h, encoder_c, ww, params):
    outs = []
    for l, (lname, oname) in enumerate(zip(('lstm0', 'lstm1', 'lstm2'),
                                           ('L_out3', 'L_out4', 'L_out5'))):
        w_ih, w_hh, b_ih, b_hh = params[lname]
        hseq = _lstm_seq_ref(x, encoder_h[l][0], encoder_c[l][0],
                             w_ih, w_hh, b_ih, b_hh)
        w_o, b_o = params[oname]
        outs.append(jnp.squeeze(jnp.tanh(hseq) @ w_o.T + b_o, axis=-1))
    return (outs[0] * ww[:, :, 0] + outs[1] * ww[:, :, 1]
            + outs[2] * ww[:, :, 2])


# ----------------------------------------------------------------------------
if __name__ == "__main__":
    cfg = dict(hidden_dim=32, layer=1, output_len=8, atten_dim=32)
    B, T, H = 4, cfg['output_len'], cfg['hidden_dim']

    key = jax.random.PRNGKey(0)
    pkey, xkey, hkey, ckey, wkey = jax.random.split(key, 5)
    params = init_params(pkey, cfg)
    fused = prepare_fused_params(params, cfg)

    x = jax.random.normal(xkey, (B, T, 2), jnp.float32)
    encoder_h = [jax.random.normal(k, (cfg['layer'], B, H), jnp.float32)
                 for k in jax.random.split(hkey, 3)]
    encoder_c = [jax.random.normal(k, (cfg['layer'], B, H), jnp.float32)
                 for k in jax.random.split(ckey, 3)]
    ww = jax.nn.softmax(jax.random.normal(wkey, (B, T, 3), jnp.float32), axis=-1)

    out = jax.jit(decoder_lstm_forward)(x, encoder_h, encoder_c, ww, fused)
    jax.block_until_ready(out)
    assert out.shape == (B, T)

    ref = decoder_lstm_reference(x, encoder_h, encoder_c, ww, params)
    max_err = float(jnp.max(jnp.abs(out - ref)))
    assert jnp.allclose(out, ref, rtol=2e-2, atol=2e-2), (
        "max abs err = %g" % max_err)

    print("KERNEL_OK")
</pallas_src>

<mosaic_0001>
module attributes {stable_mosaic.version = 11 : i64} {
  func.func @decoder_kernel(%arg0: memref<64x5xf32, #tpu.memory_space<vmem>>, %arg1: memref<8x256xf32, #tpu.memory_space<vmem>>, %arg2: memref<131x512xf32, #tpu.memory_space<vmem>>, %arg3: memref<129x3xf32, #tpu.memory_space<vmem>>, %arg4: memref<64x1xf32, #tpu.memory_space<vmem>>, %arg5: memref<64x512xf32, #tpu.memory_space<vmem>>, %arg6: memref<64x128xf32, #tpu.memory_space<vmem>>) attributes {dimension_semantics = [], scalar_prefetch = 0 : i64, scratch_operands = 2 : i64, tpu.core_type = #tpu.core_type<tc>} {
    %c128 = arith.constant 128 : index
    %c0 = arith.constant 0 : index
    %0 = vector.load %arg2[%c128, %c0] : memref<131x512xf32, #tpu.memory_space<vmem>>, vector<1x512xf32>
    %c129 = arith.constant 129 : index
    %c0_0 = arith.constant 0 : index
    %1 = vector.load %arg2[%c129, %c0_0] : memref<131x512xf32, #tpu.memory_space<vmem>>, vector<1x512xf32>
    %c130 = arith.constant 130 : index
    %c0_1 = arith.constant 0 : index
    %2 = vector.load %arg2[%c130, %c0_1] : memref<131x512xf32, #tpu.memory_space<vmem>>, vector<1x512xf32>
    %c0_2 = arith.constant 0 : index
    %c0_3 = arith.constant 0 : index
    %3 = vector.load %arg0[%c0_2, %c0_3] : memref<64x5xf32, #tpu.memory_space<vmem>>, vector<64x1xf32>
    %4 = vector.broadcast %3 : vector<64x1xf32> to vector<64x512xf32>
    %5 = vector.broadcast %0 : vector<1x512xf32> to vector<64x512xf32>
    %6 = arith.mulf %4, %5 : vector<64x512xf32>
    %c0_4 = arith.constant 0 : index
    %c1 = arith.constant 1 : index
    %7 = vector.load %arg0[%c0_4, %c1] : memref<64x5xf32, #tpu.memory_space<vmem>>, vector<64x1xf32>
    %8 = vector.broadcast %7 : vector<64x1xf32> to vector<64x512xf32>
    %9 = vector.broadcast %1 : vector<1x512xf32> to vector<64x512xf32>
    %10 = arith.mulf %8, %9 : vector<64x512xf32>
    %11 = arith.addf %6, %10 : vector<64x512xf32>
    %12 = vector.broadcast %2 : vector<1x512xf32> to vector<64x512xf32>
    %13 = arith.addf %11, %12 : vector<64x512xf32>
    %c0_5 = arith.constant 0 : index
    %c0_6 = arith.constant 0 : index
    %14 = vector.load %arg5[%c0_5, %c0_6] : memref<64x512xf32, #tpu.memory_space<vmem>>, vector<64x512xf32>
    tpu.vector_store %arg5[%c0_5, %c0_6], %13 {strides = array<i32>} : memref<64x512xf32, #tpu.memory_space<vmem>>, vector<64x512xf32>,
    %c0_7 = arith.constant 0 : index
    %c0_8 = arith.constant 0 : index
    %15 = vector.load %arg1[%c0_7, %c0_8] : memref<8x256xf32, #tpu.memory_space<vmem>>, vector<8x128xf32>
    %c0_9 = arith.constant 0 : index
    %c128_10 = arith.constant 128 : index
    %16 = vector.load %arg1[%c0_9, %c128_10] : memref<8x256xf32, #tpu.memory_space<vmem>>, vector<8x128xf32>
    %c0_11 = arith.constant 0 : index
    %c0_12 = arith.constant 0 : index
    %17 = vector.load %arg5[%c0_11, %c0_12] : memref<64x512xf32, #tpu.memory_space<vmem>>, vector<8x512xf32>
    %c0_13 = arith.constant 0 : index
    %c0_14 = arith.constant 0 : index
    %18 = vector.load %arg2[%c0_13, %c0_14] : memref<131x512xf32, #tpu.memory_space<vmem>>, vector<128x512xf32>
    %cst = arith.constant dense<0.000000e+00> : vector<8x512xf32>
    %19 = tpu.matmul %15, %18, %cst {dimension_numbers = #tpu.dot_dimension_numbers<[1], [0], [0], [1], [0, 0, 1, 1], [], []>} : vector<8x128xf32>, vector<128x512xf32>, vector<8x512xf32> -> vector<8x512xf32>
    %20 = arith.addf %17, %19 : vector<8x512xf32>
    %21 = vector.extract_strided_slice %20 {offsets = [0, 0], sizes = [8, 384], strides = [1, 1]} : vector<8x512xf32> to vector<8x384xf32>
    %22 = arith.negf %21 : vector<8x384xf32>
    %23 = math.exp %22 : vector<8x384xf32>
    %cst_15 = arith.constant 1.000000e+00 : f32
    %24 = vector.broadcast %cst_15 : f32 to vector<8x384xf32>
    %25 = arith.addf %24, %23 : vector<8x384xf32>
    %26 = arith.divf %24, %25 : vector<8x384xf32>
    %27 = vector.extract_strided_slice %26 {offsets = [0, 0], sizes = [8, 128], strides = [1, 1]} : vector<8x384xf32> to vector<8x128xf32>
    %28 = vector.extract_strided_slice %26 {offsets = [0, 128], sizes = [8, 128], strides = [1, 1]} : vector<8x384xf32> to vector<8x128xf32>
    %29 = vector.extract_strided_slice %26 {offsets = [0, 256], sizes = [8, 128], strides = [1, 1]} : vector<8x384xf32> to vector<8x128xf32>
    %30 = vector.extract_strided_slice %20 {offsets = [0, 384], sizes = [8, 128], strides = [1, 1]} : vector<8x512xf32> to vector<8x128xf32>
    %31 = math.tanh %30 : vector<8x128xf32>
    %32 = arith.mulf %28, %16 : vector<8x128xf32>
    %33 = arith.mulf %27, %31 : vector<8x128xf32>
    %34 = arith.addf %32, %33 : vector<8x128xf32>
    %35 = math.tanh %34 : vector<8x128xf32>
    %36 = arith.mulf %29, %35 : vector<8x128xf32>
    %c0_16 = arith.constant 0 : index
    %c0_17 = arith.constant 0 : index
    %37 = vector.load %arg6[%c0_16, %c0_17] : memref<64x128xf32, #tpu.memory_space<vmem>>, vector<8x128xf32>
    tpu.vector_store %arg6[%c0_16, %c0_17], %36 {strides = array<i32>} : memref<64x128xf32, #tpu.memory_space<vmem>>, vector<8x128xf32>,
    %c8 = arith.constant 8 : index
    %c0_18 = arith.constant 0 : index
    %38 = vector.load %arg5[%c8, %c0_18] : memref<64x512xf32, #tpu.memory_space<vmem>>, vector<8x512xf32>
    %c0_19 = arith.constant 0 : index
    %c0_20 = arith.constant 0 : index
    %39 = vector.load %arg2[%c0_19, %c0_20] : memref<131x512xf32, #tpu.memory_space<vmem>>, vector<128x512xf32>
    %cst_21 = arith.constant dense<0.000000e+00> : vector<8x512xf32>
    %40 = tpu.matmul %36, %39, %cst_21 {dimension_numbers = #tpu.dot_dimension_numbers<[1], [0], [0], [1], [0, 0, 1, 1], [], []>} : vector<8x128xf32>, vector<128x512xf32>, vector<8x512xf32> -> vector<8x512xf32>
    %41 = arith.addf %38, %40 : vector<8x512xf32>
    %42 = vector.extract_strided_slice %41 {offsets = [0, 0], sizes = [8, 384], strides = [1, 1]} : vector<8x512xf32> to vector<8x384xf32>
    %43 = arith.negf %42 : vector<8x384xf32>
    %44 = math.exp %43 : vector<8x384xf32>
    %cst_22 = arith.constant 1.000000e+00 : f32
    %45 = vector.broadcast %cst_22 : f32 to vector<8x384xf32>
    %46 = arith.addf %45, %44 : vector<8x384xf32>
    %47 = arith.divf %45, %46 : vector<8x384xf32>
    %48 = vector.extract_strided_slice %47 {offsets = [0, 0], sizes = [8, 128], strides = [1, 1]} : vector<8x384xf32> to vector<8x128xf32>
    %49 = vector.extract_strided_slice %47 {offsets = [0, 128], sizes = [8, 128], strides = [1, 1]} : vector<8x384xf32> to vector<8x128xf32>
    %50 = vector.extract_strided_slice %47 {offsets = [0, 256], sizes = [8, 128], strides = [1, 1]} : vector<8x384xf32> to vector<8x128xf32>
    %51 = vector.extract_strided_slice %41 {offsets = [0, 384], sizes = [8, 128], strides = [1, 1]} : vector<8x512xf32> to vector<8x128xf32>
    %52 = math.tanh %51 : vector<8x128xf32>
    %53 = arith.mulf %49, %34 : vector<8x128xf32>
    %54 = arith.mulf %48, %52 : vector<8x128xf32>
    %55 = arith.addf %53, %54 : vector<8x128xf32>
    %56 = math.tanh %55 : vector<8x128xf32>
    %57 = arith.mulf %50, %56 : vector<8x128xf32>
    %c8_23 = arith.constant 8 : index
    %c0_24 = arith.constant 0 : index
    %58 = vector.load %arg6[%c8_23, %c0_24] : memref<64x128xf32, #tpu.memory_space<vmem>>, vector<8x128xf32>
    tpu.vector_store %arg6[%c8_23, %c0_24], %57 {strides = array<i32>} : memref<64x128xf32, #tpu.memory_space<vmem>>, vector<8x128xf32>,
    %c16 = arith.constant 16 : index
    %c0_25 = arith.constant 0 : index
    %59 = vector.load %arg5[%c16, %c0_25] : memref<64x512xf32, #tpu.memory_space<vmem>>, vector<8x512xf32>
    %c0_26 = arith.constant 0 : index
    %c0_27 = arith.constant 0 : index
    %60 = vector.load %arg2[%c0_26, %c0_27] : memref<131x512xf32, #tpu.memory_space<vmem>>, vector<128x512xf32>
    %cst_28 = arith.constant dense<0.000000e+00> : vector<8x512xf32>
    %61 = tpu.matmul %57, %60, %cst_28 {dimension_numbers = #tpu.dot_dimension_numbers<[1], [0], [0], [1], [0, 0, 1, 1], [], []>} : vector<8x128xf32>, vector<128x512xf32>, vector<8x512xf32> -> vector<8x512xf32>
    %62 = arith.addf %59, %61 : vector<8x512xf32>
    %63 = vector.extract_strided_slice %62 {offsets = [0, 0], sizes = [8, 384], strides = [1, 1]} : vector<8x512xf32> to vector<8x384xf32>
    %64 = arith.negf %63 : vector<8x384xf32>
    %65 = math.exp %64 : vector<8x384xf32>
    %cst_29 = arith.constant 1.000000e+00 : f32
    %66 = vector.broadcast %cst_29 : f32 to vector<8x384xf32>
    %67 = arith.addf %66, %65 : vector<8x384xf32>
    %68 = arith.divf %66, %67 : vector<8x384xf32>
    %69 = vector.extract_strided_slice %68 {offsets = [0, 0], sizes = [8, 128], strides = [1, 1]} : vector<8x384xf32> to vector<8x128xf32>
    %70 = vector.extract_strided_slice %68 {offsets = [0, 128], sizes = [8, 128], strides = [1, 1]} : vector<8x384xf32> to vector<8x128xf32>
    %71 = vector.extract_strided_slice %68 {offsets = [0, 256], sizes = [8, 128], strides = [1, 1]} : vector<8x384xf32> to vector<8x128xf32>
    %72 = vector.extract_strided_slice %62 {offsets = [0, 384], sizes = [8, 128], strides = [1, 1]} : vector<8x512xf32> to vector<8x128xf32>
    %73 = math.tanh %72 : vector<8x128xf32>
    %74 = arith.mulf %70, %55 : vector<8x128xf32>
    %75 = arith.mulf %69, %73 : vector<8x128xf32>
    %76 = arith.addf %74, %75 : vector<8x128xf32>
    %77 = math.tanh %76 : vector<8x128xf32>
    %78 = arith.mulf %71, %77 : vector<8x128xf32>
    %c16_30 = arith.constant 16 : index
    %c0_31 = arith.constant 0 : index
    %79 = vector.load %arg6[%c16_30, %c0_31] : memref<64x128xf32, #tpu.memory_space<vmem>>, vector<8x128xf32>
    tpu.vector_store %arg6[%c16_30, %c0_31], %78 {strides = array<i32>} : memref<64x128xf32, #tpu.memory_space<vmem>>, vector<8x128xf32>,
    %c24 = arith.constant 24 : index
    %c0_32 = arith.constant 0 : index
    %80 = vector.load %arg5[%c24, %c0_32] : memref<64x512xf32, #tpu.memory_space<vmem>>, vector<8x512xf32>
    %c0_33 = arith.constant 0 : index
    %c0_34 = arith.constant 0 : index
    %81 = vector.load %arg2[%c0_33, %c0_34] : memref<131x512xf32, #tpu.memory_space<vmem>>, vector<128x512xf32>
    %cst_35 = arith.constant dense<0.000000e+00> : vector<8x512xf32>
    %82 = tpu.matmul %78, %81, %cst_35 {dimension_numbers = #tpu.dot_dimension_numbers<[1], [0], [0], [1], [0, 0, 1, 1], [], []>} : vector<8x128xf32>, vector<128x512xf32>, vector<8x512xf32> -> vector<8x512xf32>
    %83 = arith.addf %80, %82 : vector<8x512xf32>
    %84 = vector.extract_strided_slice %83 {offsets = [0, 0], sizes = [8, 384], strides = [1, 1]} : vector<8x512xf32> to vector<8x384xf32>
    %85 = arith.negf %84 : vector<8x384xf32>
    %86 = math.exp %85 : vector<8x384xf32>
    %cst_36 = arith.constant 1.000000e+00 : f32
    %87 = vector.broadcast %cst_36 : f32 to vector<8x384xf32>
    %88 = arith.addf %87, %86 : vector<8x384xf32>
    %89 = arith.divf %87, %88 : vector<8x384xf32>
    %90 = vector.extract_strided_slice %89 {offsets = [0, 0], sizes = [8, 128], strides = [1, 1]} : vector<8x384xf32> to vector<8x128xf32>
    %91 = vector.extract_strided_slice %89 {offsets = [0, 128], sizes = [8, 128], strides = [1, 1]} : vector<8x384xf32> to vector<8x128xf32>
    %92 = vector.extract_strided_slice %89 {offsets = [0, 256], sizes = [8, 128], strides = [1, 1]} : vector<8x384xf32> to vector<8x128xf32>
    %93 = vector.extract_strided_slice %83 {offsets = [0, 384], sizes = [8, 128], strides = [1, 1]} : vector<8x512xf32> to vector<8x128xf32>
    %94 = math.tanh %93 : vector<8x128xf32>
    %95 = arith.mulf %91, %76 : vector<8x128xf32>
    %96 = arith.mulf %90, %94 : vector<8x128xf32>
    %97 = arith.addf %95, %96 : vector<8x128xf32>
    %98 = math.tanh %97 : vector<8x128xf32>
    %99 = arith.mulf %92, %98 : vector<8x128xf32>
    %c24_37 = arith.constant 24 : index
    %c0_38 = arith.constant 0 : index
    %100 = vector.load %arg6[%c24_37, %c0_38] : memref<64x128xf32, #tpu.memory_space<vmem>>, vector<8x128xf32>
    tpu.vector_store %arg6[%c24_37, %c0_38], %99 {strides = array<i32>} : memref<64x128xf32, #tpu.memory_space<vmem>>, vector<8x128xf32>,
    %c32 = arith.constant 32 : index
    %c0_39 = arith.constant 0 : index
    %101 = vector.load %arg5[%c32, %c0_39] : memref<64x512xf32, #tpu.memory_space<vmem>>, vector<8x512xf32>
    %c0_40 = arith.constant 0 : index
    %c0_41 = arith.constant 0 : index
    %102 = vector.load %arg2[%c0_40, %c0_41] : memref<131x512xf32, #tpu.memory_space<vmem>>, vector<128x512xf32>
    %cst_42 = arith.constant dense<0.000000e+00> : vector<8x512xf32>
    %103 = tpu.matmul %99, %102, %cst_42 {dimension_numbers = #tpu.dot_dimension_numbers<[1], [0], [0], [1], [0, 0, 1, 1], [], []>} : vector<8x128xf32>, vector<128x512xf32>, vector<8x512xf32> -> vector<8x512xf32>
    %104 = arith.addf %101, %103 : vector<8x512xf32>
    %105 = vector.extract_strided_slice %104 {offsets = [0, 0], sizes = [8, 384], strides = [1, 1]} : vector<8x512xf32> to vector<8x384xf32>
    %106 = arith.negf %105 : vector<8x384xf32>
    %107 = math.exp %106 : vector<8x384xf32>
    %cst_43 = arith.constant 1.000000e+00 : f32
    %108 = vector.broadcast %cst_43 : f32 to vector<8x384xf32>
    %109 = arith.addf %108, %107 : vector<8x384xf32>
    %110 = arith.divf %108, %109 : vector<8x384xf32>
    %111 = vector.extract_strided_slice %110 {offsets = [0, 0], sizes = [8, 128], strides = [1, 1]} : vector<8x384xf32> to vector<8x128xf32>
    %112 = vector.extract_strided_slice %110 {offsets = [0, 128], sizes = [8, 128], strides = [1, 1]} : vector<8x384xf32> to vector<8x128xf32>
    %113 = vector.extract_strided_slice %110 {offsets = [0, 256], sizes = [8, 128], strides = [1, 1]} : vector<8x384xf32> to vector<8x128xf32>
    %114 = vector.extract_strided_slice %104 {offsets = [0, 384], sizes = [8, 128], strides = [1, 1]} : vector<8x512xf32> to vector<8x128xf32>
    %115 = math.tanh %114 : vector<8x128xf32>
    %116 = arith.mulf %112, %97 : vector<8x128xf32>
    %117 = arith.mulf %111, %115 : vector<8x128xf32>
    %118 = arith.addf %116, %117 : vector<8x128xf32>
    %119 = math.tanh %118 : vector<8x128xf32>
    %120 = arith.mulf %113, %119 : vector<8x128xf32>
    %c32_44 = arith.constant 32 : index
    %c0_45 = arith.constant 0 : index
    %121 = vector.load %arg6[%c32_44, %c0_45] : memref<64x128xf32, #tpu.memory_space<vmem>>, vector<8x128xf32>
    tpu.vector_store %arg6[%c32_44, %c0_45], %120 {strides = array<i32>} : memref<64x128xf32, #tpu.memory_space<vmem>>, vector<8x128xf32>,
    %c40 = arith.constant 40 : index
    %c0_46 = arith.constant 0 : index
    %122 = vector.load %arg5[%c40, %c0_46] : memref<64x512xf32, #tpu.memory_space<vmem>>, vector<8x512xf32>
    %c0_47 = arith.constant 0 : index
    %c0_48 = arith.constant 0 : index
    %123 = vector.load %arg2[%c0_47, %c0_48] : memref<131x512xf32, #tpu.memory_space<vmem>>, vector<128x512xf32>
    %cst_49 = arith.constant dense<0.000000e+00> : vector<8x512xf32>
    %124 = tpu.matmul %120, %123, %cst_49 {dimension_numbers = #tpu.dot_dimension_numbers<[1], [0], [0], [1], [0, 0, 1, 1], [], []>} : vector<8x128xf32>, vector<128x512xf32>, vector<8x512xf32> -> vector<8x512xf32>
    %125 = arith.addf %122, %124 : vector<8x512xf32>
    %126 = vector.extract_strided_slice %125 {offsets = [0, 0], sizes = [8, 384], strides = [1, 1]} : vector<8x512xf32> to vector<8x384xf32>
    %127 = arith.negf %126 : vector<8x384xf32>
    %128 = math.exp %127 : vector<8x384xf32>
    %cst_50 = arith.constant 1.000000e+00 : f32
    %129 = vector.broadcast %cst_50 : f32 to vector<8x384xf32>
    %130 = arith.addf %129, %128 : vector<8x384xf32>
    %131 = arith.divf %129, %130 : vector<8x384xf32>
    %132 = vector.extract_strided_slice %131 {offsets = [0, 0], sizes = [8, 128], strides = [1, 1]} : vector<8x384xf32> to vector<8x128xf32>
    %133 = vector.extract_strided_slice %131 {offsets = [0, 128], sizes = [8, 128], strides = [1, 1]} : vector<8x384xf32> to vector<8x128xf32>
    %134 = vector.extract_strided_slice %131 {offsets = [0, 256], sizes = [8, 128], strides = [1, 1]} : vector<8x384xf32> to vector<8x128xf32>
    %135 = vector.extract_strided_slice %125 {offsets = [0, 384], sizes = [8, 128], strides = [1, 1]} : vector<8x512xf32> to vector<8x128xf32>
    %136 = math.tanh %135 : vector<8x128xf32>
    %137 = arith.mulf %133, %118 : vector<8x128xf32>
    %138 = arith.mulf %132, %136 : vector<8x128xf32>
    %139 = arith.addf %137, %138 : vector<8x128xf32>
    %140 = math.tanh %139 : vector<8x128xf32>
    %141 = arith.mulf %134, %140 : vector<8x128xf32>
    %c40_51 = arith.constant 40 : index
    %c0_52 = arith.constant 0 : index
    %142 = vector.load %arg6[%c40_51, %c0_52] : memref<64x128xf32, #tpu.memory_space<vmem>>, vector<8x128xf32>
    tpu.vector_store %arg6[%c40_51, %c0_52], %141 {strides = array<i32>} : memref<64x128xf32, #tpu.memory_space<vmem>>, vector<8x128xf32>,
    %c48 = arith.constant 48 : index
    %c0_53 = arith.constant 0 : index
    %143 = vector.load %arg5[%c48, %c0_53] : memref<64x512xf32, #tpu.memory_space<vmem>>, vector<8x512xf32>
    %c0_54 = arith.constant 0 : index
    %c0_55 = arith.constant 0 : index
    %144 = vector.load %arg2[%c0_54, %c0_55] : memref<131x512xf32, #tpu.memory_space<vmem>>, vector<128x512xf32>
    %cst_56 = arith.constant dense<0.000000e+00> : vector<8x512xf32>
    %145 = tpu.matmul %141, %144, %cst_56 {dimension_numbers = #tpu.dot_dimension_numbers<[1], [0], [0], [1], [0, 0, 1, 1], [], []>} : vector<8x128xf32>, vector<128x512xf32>, vector<8x512xf32> -> vector<8x512xf32>
    %146 = arith.addf %143, %145 : vector<8x512xf32>
    %147 = vector.extract_strided_slice %146 {offsets = [0, 0], sizes = [8, 384], strides = [1, 1]} : vector<8x512xf32> to vector<8x384xf32>
    %148 = arith.negf %147 : vector<8x384xf32>
    %149 = math.exp %148 : vector<8x384xf32>
    %cst_57 = arith.constant 1.000000e+00 : f32
    %150 = vector.broadcast %cst_57 : f32 to vector<8x384xf32>
    %151 = arith.addf %150, %149 : vector<8x384xf32>
    %152 = arith.divf %150, %151 : vector<8x384xf32>
    %153 = vector.extract_strided_slice %152 {offsets = [0, 0], sizes = [8, 128], strides = [1, 1]} : vector<8x384xf32> to vector<8x128xf32>
    %154 = vector.extract_strided_slice %152 {offsets = [0, 128], sizes = [8, 128], strides = [1, 1]} : vector<8x384xf32> to vector<8x128xf32>
    %155 = vector.extract_strided_slice %152 {offsets = [0, 256], sizes = [8, 128], strides = [1, 1]} : vector<8x384xf32> to vector<8x128xf32>
    %156 = vector.extract_strided_slice %146 {offsets = [0, 384], sizes = [8, 128], strides = [1, 1]} : vector<8x512xf32> to vector<8x128xf32>
    %157 = math.tanh %156 : vector<8x128xf32>
    %158 = arith.mulf %154, %139 : vector<8x128xf32>
    %159 = arith.mulf %153, %157 : vector<8x128xf32>
    %160 = arith.addf %158, %159 : vector<8x128xf32>
    %161 = math.tanh %160 : vector<8x128xf32>
    %162 = arith.mulf %155, %161 : vector<8x128xf32>
    %c48_58 = arith.constant 48 : index
    %c0_59 = arith.constant 0 : index
    %163 = vector.load %arg6[%c48_58, %c0_59] : memref<64x128xf32, #tpu.memory_space<vmem>>, vector<8x128xf32>
    tpu.vector_store %arg6[%c48_58, %c0_59], %162 {strides = array<i32>} : memref<64x128xf32, #tpu.memory_space<vmem>>, vector<8x128xf32>,
    %c56 = arith.constant 56 : index
    %c0_60 = arith.constant 0 : index
    %164 = vector.load %arg5[%c56, %c0_60] : memref<64x512xf32, #tpu.memory_space<vmem>>, vector<8x512xf32>
    %c0_61 = arith.constant 0 : index
    %c0_62 = arith.constant 0 : index
    %165 = vector.load %arg2[%c0_61, %c0_62] : memref<131x512xf32, #tpu.memory_space<vmem>>, vector<128x512xf32>
    %cst_63 = arith.constant dense<0.000000e+00> : vector<8x512xf32>
    %166 = tpu.matmul %162, %165, %cst_63 {dimension_numbers = #tpu.dot_dimension_numbers<[1], [0], [0], [1], [0, 0, 1, 1], [], []>} : vector<8x128xf32>, vector<128x512xf32>, vector<8x512xf32> -> vector<8x512xf32>
    %167 = arith.addf %164, %166 : vector<8x512xf32>
    %168 = vector.extract_strided_slice %167 {offsets = [0, 0], sizes = [8, 384], strides = [1, 1]} : vector<8x512xf32> to vector<8x384xf32>
    %169 = arith.negf %168 : vector<8x384xf32>
    %170 = math.exp %169 : vector<8x384xf32>
    %cst_64 = arith.constant 1.000000e+00 : f32
    %171 = vector.broadcast %cst_64 : f32 to vector<8x384xf32>
    %172 = arith.addf %171, %170 : vector<8x384xf32>
    %173 = arith.divf %171, %172 : vector<8x384xf32>
    %174 = vector.extract_strided_slice %173 {offsets = [0, 0], sizes = [8, 128], strides = [1, 1]} : vector<8x384xf32> to vector<8x128xf32>
    %175 = vector.extract_strided_slice %173 {offsets = [0, 128], sizes = [8, 128], strides = [1, 1]} : vector<8x384xf32> to vector<8x128xf32>
    %176 = vector.extract_strided_slice %173 {offsets = [0, 256], sizes = [8, 128], strides = [1, 1]} : vector<8x384xf32> to vector<8x128xf32>
    %177 = vector.extract_strided_slice %167 {offsets = [0, 384], sizes = [8, 128], strides = [1, 1]} : vector<8x512xf32> to vector<8x128xf32>
    %178 = math.tanh %177 : vector<8x128xf32>
    %179 = arith.mulf %175, %160 : vector<8x128xf32>
    %180 = arith.mulf %174, %178 : vector<8x128xf32>
    %181 = arith.addf %179, %180 : vector<8x128xf32>
    %182 = math.tanh %181 : vector<8x128xf32>
    %183 = arith.mulf %176, %182 : vector<8x128xf32>
    %c56_65 = arith.constant 56 : index
    %c0_66 = arith.constant 0 : index
    %184 = vector.load %arg6[%c56_65, %c0_66] : memref<64x128xf32, #tpu.memory_space<vmem>>, vector<8x128xf32>
    tpu.vector_store %arg6[%c56_65, %c0_66], %183 {strides = array<i32>} : memref<64x128xf32, #tpu.memory_space<vmem>>, vector<8x128xf32>,
    %c0_67 = arith.constant 0 : index
    %c0_68 = arith.constant 0 : index
    %185 = vector.load %arg6[%c0_67, %c0_68] : memref<64x128xf32, #tpu.memory_space<vmem>>, vector<64x128xf32>
    %186 = math.tanh %185 : vector<64x128xf32>
    %c0_69 = arith.constant 0 : index
    %c0_70 = arith.constant 0 : index
    %187 = vector.load %arg3[%c0_69, %c0_70] : memref<129x3xf32, #tpu.memory_space<vmem>>, vector<128x3xf32>
    %cst_71 = arith.constant dense<0.000000e+00> : vector<64x3xf32>
    %188 = tpu.matmul %186, %187, %cst_71 {dimension_numbers = #tpu.dot_dimension_numbers<[1], [0], [0], [1], [0, 0, 1, 1], [], []>} : vector<64x128xf32>, vector<128x3xf32>, vector<64x3xf32> -> vector<64x3xf32>
    %c128_72 = arith.constant 128 : index
    %c0_73 = arith.constant 0 : index
    %189 = vector.load %arg3[%c128_72, %c0_73] : memref<129x3xf32, #tpu.memory_space<vmem>>, vector<1x3xf32>
    %190 = vector.broadcast %189 : vector<1x3xf32> to vector<64x3xf32>
    %191 = arith.addf %188, %190 : vector<64x3xf32>
    %c0_74 = arith.constant 0 : index
    %c2 = arith.constant 2 : index
    %192 = vector.load %arg0[%c0_74, %c2] : memref<64x5xf32, #tpu.memory_space<vmem>>, vector<64x3xf32>
    %193 = arith.mulf %191, %192 : vector<64x3xf32>
    %cst_75 = arith.constant dense<0.000000e+00> : vector<64xf32>
    %194 = vector.multi_reduction <add>, %193, %cst_75 [1] : vector<64x3xf32> to vector<64xf32>
    %195 = vector.shape_cast %194 : vector<64xf32> to vector<64x1xf32>
    %c0_76 = arith.constant 0 : index
    %c0_77 = arith.constant 0 : index
    %196 = vector.load %arg4[%c0_76, %c0_77] : memref<64x1xf32, #tpu.memory_space<vmem>>, vector<64x1xf32>
    tpu.vector_store %arg4[%c0_76, %c0_77], %195 {strides = array<i32>} : memref<64x1xf32, #tpu.memory_space<vmem>>, vector<64x1xf32>,
    return
  }
}

</mosaic_0001>

<llo_original>
// kernel: decoder_lstm_forward.1
$region0: #{decoder_lstm_forward.1}
  #allocation0 [shape = 'u32[]', space=smem, size = 0x4, offset = 0x4, fixed_abs, tag = 'smem constant byte address 0x4 - core index']
  #allocation1 [shape = 'u32[144,128]{1,0:T(1,128)}', space=vmem, size = 0x12000, scoped, tag = 'internal scratch']
  #allocation2 [shape = 'f32[64,512]{1,0:T(8,128)}', space=vmem, size = 0x20000, scoped, tag = 'scratch operand']
  #allocation3 [shape = 'f32[64,128]{1,0:T(8,128)}', space=vmem, size = 0x8000, scoped, tag = 'scratch operand']
  %s0 = inlined_call_operand.vmem [shape: f32[64,5], index: 0, kind: input, shape index: {}]
  %s1 = inlined_call_operand.vmem [shape: f32[8,256], index: 1, kind: input, shape index: {}]
  %s2 = inlined_call_operand.hbm [shape: f32[131,512], index: 2, kind: input, shape index: {}]
  %s3 = inlined_call_operand.vmem [shape: f32[129,3], index: 3, kind: input, shape index: {}]
  %s4 = inlined_call_operand.vmem [shape: f32[64,1], index: 4, kind: output, shape index: {}]
  %s5 = sld [smem:[#allocation0]]
  $region30: #{decoder_lstm_forward.1} parent=0
    _
  %s7 = ssub.s32 1, %s5
  %s8 = scalar_select 0, %s7, %s5
  $region1: #{decoder_lstm_forward.1} parent=0
    #allocation4 [shape = 'u8[278528]{0}', space=vmem, size = 0x44000, scoped, tag = 'input window, operand 2, single buffered']
    #allocation5 [shape = 's32[1]{0}', space=sflag, size = 0x4, scoped, tag = 'scoped memory for decoder_lstm_forward.1']
    %9 = vsyncpa [#allocation5], 0
    // Predicated region
    $region2: #{decoder_lstm_forward.1} parent=1 // pred_check
      _
    $region3: #{decoder_lstm_forward.1} parent=1 // pred_check_branch
      %11 = sbr.rel (0) target = $region5
    $region4: #{decoder_lstm_forward.1} parent=1 // pred_region
      _
    $region5: #{decoder_lstm_forward.1} parent=1 // pred_fallthru
      _
    // Predicated region
    $region6: #{decoder_lstm_forward.1} parent=1 // pred_check
      _
    $region7: #{decoder_lstm_forward.1} parent=1 // pred_check_branch
      %13 = sbr.rel (0) target = $region9
    $region8: #{decoder_lstm_forward.1} parent=1 // pred_region
      _
    $region9: #{decoder_lstm_forward.1} parent=1 // pred_fallthru
      _
    // Predicated region
    $region10: #{decoder_lstm_forward.1} parent=1 // pred_check
      _
    $region11: #{decoder_lstm_forward.1} parent=1 // pred_check_branch
      %15 = sbr.rel (0) target = $region13
    $region12: #{decoder_lstm_forward.1} parent=1 // pred_region
      %s17 = ssub.s32 8704, 8704
      %18 = vsyncadd [#allocation5], %s17
      %s19 = sshll.u32 [#allocation4], 4
      %s20 = int_to_ptr.vmem [resolvable:$true] %s19
      %25 = dma.hbm_to_vmem [thread:$0]  %s2, 8704, %s20, [#allocation5], 512, 512, 32
    $region13: #{decoder_lstm_forward.1} parent=1 // pred_fallthru
      _
    // Predicated region
    $region14: #{decoder_lstm_forward.1} parent=1 // pred_check
      _
    $region15: #{decoder_lstm_forward.1} parent=1 // pred_check_branch
      %27 = sbr.rel (0) target = $region17
    $region16: #{decoder_lstm_forward.1} parent=1 // pred_region
      _
    $region17: #{decoder_lstm_forward.1} parent=1 // pred_fallthru
      _
    // Predicated region
    $region18: #{decoder_lstm_forward.1} parent=1 // pred_check
      _
    $region19: #{decoder_lstm_forward.1} parent=1 // pred_check_branch
      %29 = sbr.rel (0) target = $region21
    $region20: #{decoder_lstm_forward.1} parent=1 // pred_region
      %30 = dma.done [#allocation5], 8704
    $region21: #{decoder_lstm_forward.1} parent=1 // pred_fallthru
      _
    %s31 = scalar_lea.vmem [#allocation4], 512
    %v32 = vld [vmem:[%s31] ss:$8 sm:$0xf]
    %s33 = scalar_lea.vmem [#allocation4], 513
    %v34 = vld [vmem:[%s33] ss:$8 sm:$0xf]
    %s35 = scalar_lea.vmem [#allocation4], 514
    %v36 = vld [vmem:[%s35] ss:$8 sm:$0xf]
    %v37 = vld [vmem:[%s0] sm:$0xff]
    %v38 = vld [vmem:[%s0 + $0x8] sm:$0xff]
    %v39 = vld [vmem:[%s0 + $0x10] sm:$0xff]
    %v40 = vld [vmem:[%s0 + $0x18] sm:$0xff]
    %v41 = vld [vmem:[%s0 + $0x20] sm:$0xff]
    %v42 = vld [vmem:[%s0 + $0x28] sm:$0xff]
    %v43 = vld [vmem:[%s0 + $0x30] sm:$0xff]
    %v44 = vld [vmem:[%s0 + $0x38] sm:$0xff]
    %46 = vset.pattern.permute.xlu0 0
    %47 = vperm.xlu0 %46, %v37
    %v48 = vpop.permute.xlu0 %47
    %51 = vset.pattern.permute.xlu0 0
    %52 = vperm.xlu0 %51, %v38
    %v53 = vpop.permute.xlu0 %52
    %56 = vset.pattern.permute.xlu0 0
    %57 = vperm.xlu0 %56, %v39
    %v58 = vpop.permute.xlu0 %57
    %61 = vset.pattern.permute.xlu0 0
    %62 = vperm.xlu0 %61, %v40
    %v63 = vpop.permute.xlu0 %62
    %66 = vset.pattern.permute.xlu0 0
    %67 = vperm.xlu0 %66, %v41
    %v68 = vpop.permute.xlu0 %67
    %71 = vset.pattern.permute.xlu0 0
    %72 = vperm.xlu0 %71, %v42
    %v73 = vpop.permute.xlu0 %72
    %76 = vset.pattern.permute.xlu0 0
    %77 = vperm.xlu0 %76, %v43
    %v78 = vpop.permute.xlu0 %77
    %81 = vset.pattern.permute.xlu0 0
    %82 = vperm.xlu0 %81, %v44
    %v83 = vpop.permute.xlu0 %82
    %v86 = vlaneseq
    %v87 = vshrl.u32 %v86, 7
    %v88 = vsub.s32 0, %v87
    %v89 = vrot.slane %v32, %v88
    %v90 = vlaneseq
    %v91 = vshrl.u32 %v90, 7
    %v92 = vsub.s32 1, %v91
    %v93 = vrot.slane %v32, %v92
    %v94 = vlaneseq
    %v95 = vshrl.u32 %v94, 7
    %v96 = vsub.s32 2, %v95
    %v97 = vrot.slane %v32, %v96
    %v98 = vlaneseq
    %v99 = vshrl.u32 %v98, 7
    %v100 = vsub.s32 3, %v99
    %v101 = vrot.slane %v32, %v100
    %v106 = vmul.f32 %v48, %v89
    %v107 = vmul.f32 %v48, %v93
    %v108 = vmul.f32 %v48, %v97
    %v109 = vmul.f32 %v48, %v101
    %v110 = vmul.f32 %v53, %v89
    %v111 = vmul.f32 %v53, %v93
    %v112 = vmul.f32 %v53, %v97
    %v113 = vmul.f32 %v53, %v101
    %v114 = vmul.f32 %v58, %v89
    %v115 = vmul.f32 %v58, %v93
    %v116 = vmul.f32 %v58, %v97
    %v117 = vmul.f32 %v58, %v101
    %v118 = vmul.f32 %v63, %v89
    %v119 = vmul.f32 %v63, %v93
    %v120 = vmul.f32 %v63, %v97
    %v121 = vmul.f32 %v63, %v101
    %v122 = vmul.f32 %v68, %v89
    %v123 = vmul.f32 %v68, %v93
    %v124 = vmul.f32 %v68, %v97
    %v125 = vmul.f32 %v68, %v101
    %v126 = vmul.f32 %v73, %v89
    %v127 = vmul.f32 %v73, %v93
    %v128 = vmul.f32 %v73, %v97
    %v129 = vmul.f32 %v73, %v101
    %v130 = vmul.f32 %v78, %v89
    %v131 = vmul.f32 %v78, %v93
    %v132 = vmul.f32 %v78, %v97
    %v133 = vmul.f32 %v78, %v101
    %v134 = vmul.f32 %v83, %v89
    %v135 = vmul.f32 %v83, %v93
    %v136 = vmul.f32 %v83, %v97
    %v137 = vmul.f32 %v83, %v101
    %138 = vset.pattern.permute.xlu0 1
    %139 = vperm.xlu0 %138, %v37
    %v140 = vpop.permute.xlu0 %139
    %142 = vset.pattern.permute.xlu0 1
    %143 = vperm.xlu0 %142, %v38
    %v144 = vpop.permute.xlu0 %143
    %146 = vset.pattern.permute.xlu0 1
    %147 = vperm.xlu0 %146, %v39
    %v148 = vpop.permute.xlu0 %147
    %150 = vset.pattern.permute.xlu0 1
    %151 = vperm.xlu0 %150, %v40
    %v152 = vpop.permute.xlu0 %151
    %154 = vset.pattern.permute.xlu0 1
    %155 = vperm.xlu0 %154, %v41
    %v156 = vpop.permute.xlu0 %155
    %158 = vset.pattern.permute.xlu0 1
    %159 = vperm.xlu0 %158, %v42
    %v160 = vpop.permute.xlu0 %159
    %162 = vset.pattern.permute.xlu0 1
    %163 = vperm.xlu0 %162, %v43
    %v164 = vpop.permute.xlu0 %163
    %166 = vset.pattern.permute.xlu0 1
    %167 = vperm.xlu0 %166, %v44
    %v168 = vpop.permute.xlu0 %167
    %v171 = vlaneseq
    %v172 = vshrl.u32 %v171, 7
    %v173 = vsub.s32 0, %v172
    %v174 = vrot.slane %v34, %v173
    %v175 = vlaneseq
    %v176 = vshrl.u32 %v175, 7
    %v177 = vsub.s32 1, %v176
    %v178 = vrot.slane %v34, %v177
    %v179 = vlaneseq
    %v180 = vshrl.u32 %v179, 7
    %v181 = vsub.s32 2, %v180
    %v182 = vrot.slane %v34, %v181
    %v183 = vlaneseq
    %v184 = vshrl.u32 %v183, 7
    %v185 = vsub.s32 3, %v184
    %v186 = vrot.slane %v34, %v185
    %v191 = vmul.f32 %v140, %v174
    %v192 = vmul.f32 %v140, %v178
    %v193 = vmul.f32 %v140, %v182
    %v194 = vmul.f32 %v140, %v186
    %v195 = vmul.f32 %v144, %v174
    %v196 = vmul.f32 %v144, %v178
    %v197 = vmul.f32 %v144, %v182
    %v198 = vmul.f32 %v144, %v186
    %v199 = vmul.f32 %v148, %v174
    %v200 = vmul.f32 %v148, %v178
    %v201 = vmul.f32 %v148, %v182
    %v202 = vmul.f32 %v148, %v186
    %v203 = vmul.f32 %v152, %v174
    %v204 = vmul.f32 %v152, %v178
    %v205 = vmul.f32 %v152, %v182
    %v206 = vmul.f32 %v152, %v186
    %v207 = vmul.f32 %v156, %v174
    %v208 = vmul.f32 %v156, %v178
    %v209 = vmul.f32 %v156, %v182
    %v210 = vmul.f32 %v156, %v186
    %v211 = vmul.f32 %v160, %v174
    %v212 = vmul.f32 %v160, %v178
    %v213 = vmul.f32 %v160, %v182
    %v214 = vmul.f32 %v160, %v186
    %v215 = vmul.f32 %v164, %v174
    %v216 = vmul.f32 %v164, %v178
    %v217 = vmul.f32 %v164, %v182
    %v218 = vmul.f32 %v164, %v186
    %v219 = vmul.f32 %v168, %v174
    %v220 = vmul.f32 %v168, %v178
    %v221 = vmul.f32 %v168, %v182
    %v222 = vmul.f32 %v168, %v186
    %v223 = vadd.f32 %v106, %v191
    %v224 = vadd.f32 %v107, %v192
    %v225 = vadd.f32 %v108, %v193
    %v226 = vadd.f32 %v109, %v194
    %v227 = vadd.f32 %v110, %v195
    %v228 = vadd.f32 %v111, %v196
    %v229 = vadd.f32 %v112, %v197
    %v230 = vadd.f32 %v113, %v198
    %v231 = vadd.f32 %v114, %v199
    %v232 = vadd.f32 %v115, %v200
    %v233 = vadd.f32 %v116, %v201
    %v234 = vadd.f32 %v117, %v202
    %v235 = vadd.f32 %v118, %v203
    %v236 = vadd.f32 %v119, %v204
    %v237 = vadd.f32 %v120, %v205
    %v238 = vadd.f32 %v121, %v206
    %v239 = vadd.f32 %v122, %v207
    %v240 = vadd.f32 %v123, %v208
    %v241 = vadd.f32 %v124, %v209
    %v242 = vadd.f32 %v125, %v210
    %v243 = vadd.f32 %v126, %v211
    %v244 = vadd.f32 %v127, %v212
    %v245 = vadd.f32 %v128, %v213
    %v246 = vadd.f32 %v129, %v214
    %v247 = vadd.f32 %v130, %v215
    %v248 = vadd.f32 %v131, %v216
    %v249 = vadd.f32 %v132, %v217
    %v250 = vadd.f32 %v133, %v218
    %v251 = vadd.f32 %v134, %v219
    %v252 = vadd.f32 %v135, %v220
    %v253 = vadd.f32 %v136, %v221
    %v254 = vadd.f32 %v137, %v222
    %v256 = vlaneseq
    %v257 = vshrl.u32 %v256, 7
    %v258 = vsub.s32 0, %v257
    %v259 = vrot.slane %v36, %v258
    %v260 = vlaneseq
    %v261 = vshrl.u32 %v260, 7
    %v262 = vsub.s32 1, %v261
    %v263 = vrot.slane %v36, %v262
    %v264 = vlaneseq
    %v265 = vshrl.u32 %v264, 7
    %v266 = vsub.s32 2, %v265
    %v267 = vrot.slane %v36, %v266
    %v268 = vlaneseq
    %v269 = vshrl.u32 %v268, 7
    %v270 = vsub.s32 3, %v269
    %v271 = vrot.slane %v36, %v270
    %v276 = vadd.f32 %v223, %v259
    %v277 = vadd.f32 %v224, %v263
    %v278 = vadd.f32 %v225, %v267
    %v279 = vadd.f32 %v226, %v271
    %v280 = vadd.f32 %v227, %v259
    %v281 = vadd.f32 %v228, %v263
    %v282 = vadd.f32 %v229, %v267
    %v283 = vadd.f32 %v230, %v271
    %v284 = vadd.f32 %v231, %v259
    %v285 = vadd.f32 %v232, %v263
    %v286 = vadd.f32 %v233, %v267
    %v287 = vadd.f32 %v234, %v271
    %v288 = vadd.f32 %v235, %v259
    %v289 = vadd.f32 %v236, %v263
    %v290 = vadd.f32 %v237, %v267
    %v291 = vadd.f32 %v238, %v271
    %v292 = vadd.f32 %v239, %v259
    %v293 = vadd.f32 %v240, %v263
    %v294 = vadd.f32 %v241, %v267
    %v295 = vadd.f32 %v242, %v271
    %v296 = vadd.f32 %v243, %v259
    %v297 = vadd.f32 %v244, %v263
    %v298 = vadd.f32 %v245, %v267
    %v299 = vadd.f32 %v246, %v271
    %v300 = vadd.f32 %v247, %v259
    %v301 = vadd.f32 %v248, %v263
    %v302 = vadd.f32 %v249, %v267
    %v303 = vadd.f32 %v250, %v271
    %v304 = vadd.f32 %v251, %v259
    %v305 = vadd.f32 %v252, %v263
    %v306 = vadd.f32 %v253, %v267
    %v307 = vadd.f32 %v254, %v271
    %308 = vst [vmem:[#allocation2] sm:$0xff] %v276
    %309 = vst [vmem:[#allocation2 + $0x8] sm:$0xff] %v277
    %310 = vst [vmem:[#allocation2 + $0x10] sm:$0xff] %v278
    %311 = vst [vmem:[#allocation2 + $0x18] sm:$0xff] %v279
    %312 = vst [vmem:[#allocation2 + $0x20] sm:$0xff] %v280
    %313 = vst [vmem:[#allocation2 + $0x28] sm:$0xff] %v281
    %314 = vst [vmem:[#allocation2 + $0x30] sm:$0xff] %v282
    %315 = vst [vmem:[#allocation2 + $0x38] sm:$0xff] %v283
    %316 = vst [vmem:[#allocation2 + $0x40] sm:$0xff] %v284
    %317 = vst [vmem:[#allocation2 + $0x48] sm:$0xff] %v285
    %318 = vst [vmem:[#allocation2 + $0x50] sm:$0xff] %v286
    %319 = vst [vmem:[#allocation2 + $0x58] sm:$0xff] %v287
    %320 = vst [vmem:[#allocation2 + $0x60] sm:$0xff] %v288
    %321 = vst [vmem:[#allocation2 + $0x68] sm:$0xff] %v289
    %322 = vst [vmem:[#allocation2 + $0x70] sm:$0xff] %v290
    %323 = vst [vmem:[#allocation2 + $0x78] sm:$0xff] %v291
    %324 = vst [vmem:[#allocation2 + $0x80] sm:$0xff] %v292
    %325 = vst [vmem:[#allocation2 + $0x88] sm:$0xff] %v293
    %326 = vst [vmem:[#allocation2 + $0x90] sm:$0xff] %v294
    %327 = vst [vmem:[#allocation2 + $0x98] sm:$0xff] %v295
    %328 = vst [vmem:[#allocation2 + $0xa0] sm:$0xff] %v296
    %329 = vst [vmem:[#allocation2 + $0xa8] sm:$0xff] %v297
    %330 = vst [vmem:[#allocation2 + $0xb0] sm:$0xff] %v298
    %331 = vst [vmem:[#allocation2 + $0xb8] sm:$0xff] %v299
    %332 = vst [vmem:[#allocation2 + $0xc0] sm:$0xff] %v300
    %333 = vst [vmem:[#allocation2 + $0xc8] sm:$0xff] %v301
    %334 = vst [vmem:[#allocation2 + $0xd0] sm:$0xff] %v302
    %335 = vst [vmem:[#allocation2 + $0xd8] sm:$0xff] %v303
    %336 = vst [vmem:[#allocation2 + $0xe0] sm:$0xff] %v304
    %337 = vst [vmem:[#allocation2 + $0xe8] sm:$0xff] %v305
    %338 = vst [vmem:[#allocation2 + $0xf0] sm:$0xff] %v306
    %339 = vst [vmem:[#allocation2 + $0xf8] sm:$0xff] %v307
    %v340 = vld [vmem:[%s1] sm:$0xff]
    %v341 = vld [vmem:[%s1 + $0x8] sm:$0xff]
    %v342 = vld [vmem:[#allocation2] sm:$0xff]
    %v343 = vld [vmem:[#allocation2 + $0x8] sm:$0xff]
    %v344 = vld [vmem:[#allocation2 + $0x10] sm:$0xff]
    %v345 = vld [vmem:[#allocation2 + $0x18] sm:$0xff]
    %v346 = vld [vmem:[#allocation4] sm:$0xff]
    %v347 = vld [vmem:[#allocation4 + $0x8] sm:$0xff]
    %v348 = vld [vmem:[#allocation4 + $0x10] sm:$0xff]
    %v349 = vld [vmem:[#allocation4 + $0x18] sm:$0xff]
    %v350 = vld [vmem:[#allocation4 + $0x20] sm:$0xff]
    %v351 = vld [vmem:[#allocation4 + $0x28] sm:$0xff]
    %v352 = vld [vmem:[#allocation4 + $0x30] sm:$0xff]
    %v353 = vld [vmem:[#allocation4 + $0x38] sm:$0xff]
    %v354 = vld [vmem:[#allocation4 + $0x40] sm:$0xff]
    %v355 = vld [vmem:[#allocation4 + $0x48] sm:$0xff]
    %v356 = vld [vmem:[#allocation4 + $0x50] sm:$0xff]
    %v357 = vld [vmem:[#allocation4 + $0x58] sm:$0xff]
    %v358 = vld [vmem:[#allocation4 + $0x60] sm:$0xff]
    %v359 = vld [vmem:[#allocation4 + $0x68] sm:$0xff]
    %v360 = vld [vmem:[#allocation4 + $0x70] sm:$0xff]
    %v361 = vld [vmem:[#allocation4 + $0x78] sm:$0xff]
    %v362 = vld [vmem:[#allocation4 + $0x80] sm:$0xff]
    %v363 = vld [vmem:[#allocation4 + $0x88] sm:$0xff]
    %v364 = vld [vmem:[#allocation4 + $0x90] sm:$0xff]
    %v365 = vld [vmem:[#allocation4 + $0x98] sm:$0xff]
    %v366 = vld [vmem:[#allocation4 + $0xa0] sm:$0xff]
    %v367 = vld [vmem:[#allocation4 + $0xa8] sm:$0xff]
    %v368 = vld [vmem:[#allocation4 + $0xb0] sm:$0xff]
    %v369 = vld [vmem:[#allocation4 + $0xb8] sm:$0xff]
    %v370 = vld [vmem:[#allocation4 + $0xc0] sm:$0xff]
    %v371 = vld [vmem:[#allocation4 + $0xc8] sm:$0xff]
    %v372 = vld [vmem:[#allocation4 + $0xd0] sm:$0xff]
    %v373 = vld [vmem:[#allocation4 + $0xd8] sm:$0xff]
    %v374 = vld [vmem:[#allocation4 + $0xe0] sm:$0xff]
    %v375 = vld [vmem:[#allocation4 + $0xe8] sm:$0xff]
    %v376 = vld [vmem:[#allocation4 + $0xf0] sm:$0xff]
    %v377 = vld [vmem:[#allocation4 + $0xf8] sm:$0xff]
    %v378 = vld [vmem:[#allocation4 + $0x100] sm:$0xff]
    %v379 = vld [vmem:[#allocation4 + $0x108] sm:$0xff]
    %v380 = vld [vmem:[#allocation4 + $0x110] sm:$0xff]
    %v381 = vld [vmem:[#allocation4 + $0x118] sm:$0xff]
    %v382 = vld [vmem:[#allocation4 + $0x120] sm:$0xff]
    %v383 = vld [vmem:[#allocation4 + $0x128] sm:$0xff]
    %v384 = vld [vmem:[#allocation4 + $0x130] sm:$0xff]
    %v385 = vld [vmem:[#allocation4 + $0x138] sm:$0xff]
    %v386 = vld [vmem:[#allocation4 + $0x140] sm:$0xff]
    %v387 = vld [vmem:[#allocation4 + $0x148] sm:$0xff]
    %v388 = vld [vmem:[#allocation4 + $0x150] sm:$0xff]
    %v389 = vld [vmem:[#allocation4 + $0x158] sm:$0xff]
    %v390 = vld [vmem:[#allocation4 + $0x160] sm:$0xff]
    %v391 = vld [vmem:[#allocation4 + $0x168] sm:$0xff]
    %v392 = vld [vmem:[#allocation4 + $0x170] sm:$0xff]
    %v393 = vld [vmem:[#allocation4 + $0x178] sm:$0xff]
    %v394 = vld [vmem:[#allocation4 + $0x180] sm:$0xff]
    %v395 = vld [vmem:[#allocation4 + $0x188] sm:$0xff]
    %v396 = vld [vmem:[#allocation4 + $0x190] sm:$0xff]
    %v397 = vld [vmem:[#allocation4 + $0x198] sm:$0xff]
    %v398 = vld [vmem:[#allocation4 + $0x1a0] sm:$0xff]
    %v399 = vld [vmem:[#allocation4 + $0x1a8] sm:$0xff]
    %v400 = vld [vmem:[#allocation4 + $0x1b0] sm:$0xff]
    %v401 = vld [vmem:[#allocation4 + $0x1b8] sm:$0xff]
    %v402 = vld [vmem:[#allocation4 + $0x1c0] sm:$0xff]
    %v403 = vld [vmem:[#allocation4 + $0x1c8] sm:$0xff]
    %v404 = vld [vmem:[#allocation4 + $0x1d0] sm:$0xff]
    %v405 = vld [vmem:[#allocation4 + $0x1d8] sm:$0xff]
    %v406 = vld [vmem:[#allocation4 + $0x1e0] sm:$0xff]
    %v407 = vld [vmem:[#allocation4 + $0x1e8] sm:$0xff]
    %v408 = vld [vmem:[#allocation4 + $0x1f0] sm:$0xff]
    %v409 = vld [vmem:[#allocation4 + $0x1f8] sm:$0xff]
    %410 = vmatprep.subr.mxu0 %v407
    %411 = vmatpush1.msra.mxu0 %v406
    %412 = vmatprep.subr.mxu0 %v403
    %413 = vmatpush1.msra.mxu0 %v402
    %414 = vmatprep.subr.mxu0 %v399
    %415 = vmatpush1.msra.mxu0 %v398
    %416 = vmatprep.subr.mxu0 %v395
    %417 = vmatpush1.msra.mxu0 %v394
    %418 = vmatprep.subr.mxu0 %v391
    %419 = vmatpush1.msra.mxu0 %v390
    %420 = vmatprep.subr.mxu0 %v387
    %421 = vmatpush1.msra.mxu0 %v386
    %422 = vmatprep.subr.mxu0 %v383
    %423 = vmatpush1.msra.mxu0 %v382
    %424 = vmatprep.subr.mxu0 %v379
    %425 = vmatpush1.msra.mxu0 %v378
    %426 = vmatprep.subr.mxu0 %v375
    %427 = vmatpush1.msra.mxu0 %v374
    %428 = vmatprep.subr.mxu0 %v371
    %429 = vmatpush1.msra.mxu0 %v370
    %430 = vmatprep.subr.mxu0 %v367
    %431 = vmatpush1.msra.mxu0 %v366
    %432 = vmatprep.subr.mxu0 %v363
    %433 = vmatpush1.msra.mxu0 %v362
    %434 = vmatprep.subr.mxu0 %v359
    %435 = vmatpush1.msra.mxu0 %v358
    %436 = vmatprep.subr.mxu0 %v355
    %437 = vmatpush1.msra.mxu0 %v354
    %438 = vmatprep.subr.mxu0 %v351
    %439 = vmatpush1.msra.mxu0 %v350
    %440 = vmatprep.subr.mxu0 %v347
    %441 = vmatpush1.msra.mxu0 %v346
    %442 = vmatprep.subr.mxu0 0.0
    %443 = vmatpush2.msra.mxu0 0.0
    %444 = vmatprep.subr.mxu0 0.0
    %445 = vmatpush2.msra.mxu0 0.0
    %446 = vmatprep.subr.mxu0 0.0
    %447 = vmatpush2.msra.mxu0 0.0
    %448 = vmatprep.subr.mxu0 0.0
    %449 = vmatpush2.msra.mxu0 0.0
    %450 = vmatprep.subr.mxu0 0.0
    %451 = vmatpush2.msra.mxu0 0.0
    %452 = vmatprep.subr.mxu0 0.0
    %453 = vmatpush2.msra.mxu0 0.0
    %454 = vmatprep.subr.mxu0 0.0
    %455 = vmatpush2.msra.mxu0 0.0
    %456 = vmatprep.subr.mxu0 0.0
    %457 = vmatpush2.msra.mxu0 0.0
    %458 = vmatprep.subr.mxu0 0.0
    %459 = vmatpush2.msra.mxu0 0.0
    %460 = vmatprep.subr.mxu0 0.0
    %461 = vmatpush2.msra.mxu0 0.0
    %462 = vmatprep.subr.mxu0 0.0
    %463 = vmatpush2.msra.mxu0 0.0
    %464 = vmatprep.subr.mxu0 0.0
    %465 = vmatpush2.msra.mxu0 0.0
    %466 = vmatprep.subr.mxu0 0.0
    %467 = vmatpush2.msra.mxu0 0.0
    %468 = vmatprep.subr.mxu0 0.0
    %469 = vmatpush2.msra.mxu0 0.0
    %470 = vmatprep.subr.mxu0 0.0
    %471 = vmatpush2.msra.mxu0 0.0
    %472 = vmatprep.subr.mxu0 0.0
    %473 = vmatpush2.msra.mxu0 0.0
    %474 = vmatprep.mubr.f32.mxu0 0.0
    %475 = vmatmul.mubr.f32.gmra.mxu0 %v340
    %v476 = vpop.f32.mrf.mxu0
    %v477 = vadd.f32 0.0, %v476
    %v478 = vpop.f32.mrf.mxu0
    %v479 = vadd.f32 0.0, %v478
    %480 = vdwg.mxu0
    %481 = vmatprep.subr.mxu0 %v409
    %482 = vmatpush1.msra.mxu0 %v408
    %483 = vmatprep.subr.mxu0 %v405
    %484 = vmatpush1.msra.mxu0 %v404
    %485 = vmatprep.subr.mxu0 %v401
    %486 = vmatpush1.msra.mxu0 %v400
    %487 = vmatprep.subr.mxu0 %v397
    %488 = vmatpush1.msra.mxu0 %v396
    %489 = vmatprep.subr.mxu0 %v393
    %490 = vmatpush1.msra.mxu0 %v392
    %491 = vmatprep.subr.mxu0 %v389
    %492 = vmatpush1.msra.mxu0 %v388
    %493 = vmatprep.subr.mxu0 %v385
    %494 = vmatpush1.msra.mxu0 %v384
    %495 = vmatprep.subr.mxu0 %v381
    %496 = vmatpush1.msra.mxu0 %v380
    %497 = vmatprep.subr.mxu0 %v377
    %498 = vmatpush1.msra.mxu0 %v376
    %499 = vmatprep.subr.mxu0 %v373
    %500 = vmatpush1.msra.mxu0 %v372
    %501 = vmatprep.subr.mxu0 %v369
    %502 = vmatpush1.msra.mxu0 %v368
    %503 = vmatprep.subr.mxu0 %v365
    %504 = vmatpush1.msra.mxu0 %v364
    %505 = vmatprep.subr.mxu0 %v361
    %506 = vmatpush1.msra.mxu0 %v360
    %507 = vmatprep.subr.mxu0 %v357
    %508 = vmatpush1.msra.mxu0 %v356
    %509 = vmatprep.subr.mxu0 %v353
    %510 = vmatpush1.msra.mxu0 %v352
    %511 = vmatprep.subr.mxu0 %v349
    %512 = vmatpush1.msra.mxu0 %v348
    %513 = vmatprep.subr.mxu0 0.0
    %514 = vmatpush2.msra.mxu0 0.0
    %515 = vmatprep.subr.mxu0 0.0
    %516 = vmatpush2.msra.mxu0 0.0
    %517 = vmatprep.subr.mxu0 0.0
    %518 = vmatpush2.msra.mxu0 0.0
    %519 = vmatprep.subr.mxu0 0.0
    %520 = vmatpush2.msra.mxu0 0.0
    %521 = vmatprep.subr.mxu0 0.0
    %522 = vmatpush2.msra.mxu0 0.0
    %523 = vmatprep.subr.mxu0 0.0
    %524 = vmatpush2.msra.mxu0 0.0
    %525 = vmatprep.subr.mxu0 0.0
    %526 = vmatpush2.msra.mxu0 0.0
    %527 = vmatprep.subr.mxu0 0.0
    %528 = vmatpush2.msra.mxu0 0.0
    %529 = vmatprep.subr.mxu0 0.0
    %530 = vmatpush2.msra.mxu0 0.0
    %531 = vmatprep.subr.mxu0 0.0
    %532 = vmatpush2.msra.mxu0 0.0
    %533 = vmatprep.subr.mxu0 0.0
    %534 = vmatpush2.msra.mxu0 0.0
    %535 = vmatprep.subr.mxu0 0.0
    %536 = vmatpush2.msra.mxu0 0.0
    %537 = vmatprep.subr.mxu0 0.0
    %538 = vmatpush2.msra.mxu0 0.0
    %539 = vmatprep.subr.mxu0 0.0
    %540 = vmatpush2.msra.mxu0 0.0
    %541 = vmatprep.subr.mxu0 0.0
    %542 = vmatpush2.msra.mxu0 0.0
    %543 = vmatprep.subr.mxu0 0.0
    %544 = vmatpush2.msra.mxu0 0.0
    %545 = vmatprep.mubr.f32.mxu0 0.0
    %546 = vmatmul.mubr.f32.gmra.mxu0 %v340
    %v547 = vpop.f32.mrf.mxu0
    %v548 = vadd.f32 0.0, %v547
    %v549 = vpop.f32.mrf.mxu0
    %v550 = vadd.f32 0.0, %v549
    %551 = vdwg.mxu0
    %v552 = vadd.f32 %v342, %v477
    %v553 = vadd.f32 %v343, %v479
    %v554 = vadd.f32 %v344, %v548
    %v555 = vadd.f32 %v345, %v550
    %v556 = vxor.u32 %v552, 2147483648
    %v557 = vxor.u32 %v553, 2147483648
    %v558 = vxor.u32 %v554, 2147483648
    %v559 = vmul.f32 %v556, 1.442695
    %v560 = vpow.pop %v559
    %v561 = vmul.f32 %v557, 1.442695
    %v562 = vpow.pop %v561
    %v563 = vmul.f32 %v558, 1.442695
    %v564 = vpow.pop %v563
    %v565 = vadd.f32 %v560, 1.0
    %v566 = vadd.f32 %v562, 1.0
    %v567 = vadd.f32 %v564, 1.0
    %v568 = vrcp.pop %v565
    %v569 = vmul.f32 1.0, %v568
    %v570 = vrcp.pop %v566
    %v571 = vmul.f32 1.0, %v570
    %v572 = vrcp.pop %v567
    %v573 = vmul.f32 1.0, %v572
    %v574 = vtanh.pop %v555
    %v575 = vmul.f32 %v571, %v341
    %v576 = vmul.f32 %v569, %v574
    %v577 = vadd.f32 %v575, %v576
    %v578 = vtanh.pop %v577
    %v579 = vmul.f32 %v573, %v578
    %580 = vst [vmem:[#allocation3] sm:$0xff] %v579
    %v581 = vld [vmem:[#allocation2 + $0x20] sm:$0xff]
    %v582 = vld [vmem:[#allocation2 + $0x28] sm:$0xff]
    %v583 = vld [vmem:[#allocation2 + $0x30] sm:$0xff]
    %v584 = vld [vmem:[#allocation2 + $0x38] sm:$0xff]
    %v585 = vld [vmem:[#allocation4] sm:$0xff]
    %v586 = vld [vmem:[#allocation4 + $0x8] sm:$0xff]
    %v587 = vld [vmem:[#allocation4 + $0x10] sm:$0xff]
    %v588 = vld [vmem:[#allocation4 + $0x18] sm:$0xff]
    %v589 = vld [vmem:[#allocation4 + $0x20] sm:$0xff]
    %v590 = vld [vmem:[#allocation4 + $0x28] sm:$0xff]
    %v591 = vld [vmem:[#allocation4 + $0x30] sm:$0xff]
    %v592 = vld [vmem:[#allocation4 + $0x38] sm:$0xff]
    %v593 = vld [vmem:[#allocation4 + $0x40] sm:$0xff]
    %v594 = vld [vmem:[#allocation4 + $0x48] sm:$0xff]
    %v595 = vld [vmem:[#allocation4 + $0x50] sm:$0xff]
    %v596 = vld [vmem:[#allocation4 + $0x58] sm:$0xff]
    %v597 = vld [vmem:[#allocation4 + $0x60] sm:$0xff]
    %v598 = vld [vmem:[#allocation4 + $0x68] sm:$0xff]
    %v599 = vld [vmem:[#allocation4 + $0x70] sm:$0xff]
    %v600 = vld [vmem:[#allocation4 + $0x78] sm:$0xff]
    %v601 = vld [vmem:[#allocation4 + $0x80] sm:$0xff]
    %v602 = vld [vmem:[#allocation4 + $0x88] sm:$0xff]
    %v603 = vld [vmem:[#allocation4 + $0x90] sm:$0xff]
    %v604 = vld [vmem:[#allocation4 + $0x98] sm:$0xff]
    %v605 = vld [vmem:[#allocation4 + $0xa0] sm:$0xff]
    %v606 = vld [vmem:[#allocation4 + $0xa8] sm:$0xff]
    %v607 = vld [vmem:[#allocation4 + $0xb0] sm:$0xff]
    %v608 = vld [vmem:[#allocation4 + $0xb8] sm:$0xff]
    %v609 = vld [vmem:[#allocation4 + $0xc0] sm:$0xff]
    %v610 = vld [vmem:[#allocation4 + $0xc8] sm:$0xff]
    %v611 = vld [vmem:[#allocation4 + $0xd0] sm:$0xff]
    %v612 = vld [vmem:[#allocation4 + $0xd8] sm:$0xff]
    %v613 = vld [vmem:[#allocation4 + $0xe0] sm:$0xff]
    %v614 = vld [vmem:[#allocation4 + $0xe8] sm:$0xff]
    %v615 = vld [vmem:[#allocation4 + $0xf0] sm:$0xff]
    %v616 = vld [vmem:[#allocation4 + $0xf8] sm:$0xff]
    %v617 = vld [vmem:[#allocation4 + $0x100] sm:$0xff]
    %v618 = vld [vmem:[#allocation4 + $0x108] sm:$0xff]
    %v619 = vld [vmem:[#allocation4 + $0x110] sm:$0xff]
    %v620 = vld [vmem:[#allocation4 + $0x118] sm:$0xff]
    %v621 = vld [vmem:[#allocation4 + $0x120] sm:$0xff]
    %v622 = vld [vmem:[#allocation4 + $0x128] sm:$0xff]
    %v623 = vld [vmem:[#allocation4 + $0x130] sm:$0xff]
    %v624 = vld [vmem:[#allocation4 + $0x138] sm:$0xff]
    %v625 = vld [vmem:[#allocation4 + $0x140] sm:$0xff]
    %v626 = vld [vmem:[#allocation4 + $0x148] sm:$0xff]
    %v627 = vld [vmem:[#allocation4 + $0x150] sm:$0xff]
    %v628 = vld [vmem:[#allocation4 + $0x158] sm:$0xff]
    %v629 = vld [vmem:[#allocation4 + $0x160] sm:$0xff]
    %v630 = vld [vmem:[#allocation4 + $0x168] sm:$0xff]
    %v631 = vld [vmem:[#allocation4 + $0x170] sm:$0xff]
    %v632 = vld [vmem:[#allocation4 + $0x178] sm:$0xff]
    %v633 = vld [vmem:[#allocation4 + $0x180] sm:$0xff]
    %v634 = vld [vmem:[#allocation4 + $0x188] sm:$0xff]
    %v635 = vld [vmem:[#allocation4 + $0x190] sm:$0xff]
    %v636 = vld [vmem:[#allocation4 + $0x198] sm:$0xff]
    %v637 = vld [vmem:[#allocation4 + $0x1a0] sm:$0xff]
    %v638 = vld [vmem:[#allocation4 + $0x1a8] sm:$0xff]
    %v639 = vld [vmem:[#allocation4 + $0x1b0] sm:$0xff]
    %v640 = vld [vmem:[#allocation4 + $0x1b8] sm:$0xff]
    %v641 = vld [vmem:[#allocation4 + $0x1c0] sm:$0xff]
    %v642 = vld [vmem:[#allocation4 + $0x1c8] sm:$0xff]
    %v643 = vld [vmem:[#allocation4 + $0x1d0] sm:$0xff]
    %v644 = vld [vmem:[#allocation4 + $0x1d8] sm:$0xff]
    %v645 = vld [vmem:[#allocation4 + $0x1e0] sm:$0xff]
    %v646 = vld [vmem:[#allocation4 + $0x1e8] sm:$0xff]
    %v647 = vld [vmem:[#allocation4 + $0x1f0] sm:$0xff]
    %v648 = vld [vmem:[#allocation4 + $0x1f8] sm:$0xff]
    %649 = vmatprep.subr.mxu0 %v646
    %650 = vmatpush1.msra.mxu0 %v645
    %651 = vmatprep.subr.mxu0 %v642
    %652 = vmatpush1.msra.mxu0 %v641
    %653 = vmatprep.subr.mxu0 %v638
    %654 = vmatpush1.msra.mxu0 %v637
    %655 = vmatprep.subr.mxu0 %v634
    %656 = vmatpush1.msra.mxu0 %v633
    %657 = vmatprep.subr.mxu0 %v630
    %658 = vmatpush1.msra.mxu0 %v629
    %659 = vmatprep.subr.mxu0 %v626
    %660 = vmatpush1.msra.mxu0 %v625
    %661 = vmatprep.subr.mxu0 %v622
    %662 = vmatpush1.msra.mxu0 %v621
    %663 = vmatprep.subr.mxu0 %v618
    %664 = vmatpush1.msra.mxu0 %v617
    %665 = vmatprep.subr.mxu0 %v614
    %666 = vmatpush1.msra.mxu0 %v613
    %667 = vmatprep.subr.mxu0 %v610
    %668 = vmatpush1.msra.mxu0 %v609
    %669 = vmatprep.subr.mxu0 %v606
    %670 = vmatpush1.msra.mxu0 %v605
    %671 = vmatprep.subr.mxu0 %v602
    %672 = vmatpush1.msra.mxu0 %v601
    %673 = vmatprep.subr.mxu0 %v598
    %674 = vmatpush1.msra.mxu0 %v597
    %675 = vmatprep.subr.mxu0 %v594
    %676 = vmatpush1.msra.mxu0 %v593
    %677 = vmatprep.subr.mxu0 %v590
    %678 = vmatpush1.msra.mxu0 %v589
    %679 = vmatprep.subr.mxu0 %v586
    %680 = vmatpush1.msra.mxu0 %v585
    %681 = vmatprep.subr.mxu0 0.0
    %682 = vmatpush2.msra.mxu0 0.0
    %683 = vmatprep.subr.mxu0 0.0
    %684 = vmatpush2.msra.mxu0 0.0
    %685 = vmatprep.subr.mxu0 0.0
    %686 = vmatpush2.msra.mxu0 0.0
    %687 = vmatprep.subr.mxu0 0.0
    %688 = vmatpush2.msra.mxu0 0.0
    %689 = vmatprep.subr.mxu0 0.0
    %690 = vmatpush2.msra.mxu0 0.0
    %691 = vmatprep.subr.mxu0 0.0
    %692 = vmatpush2.msra.mxu0 0.0
    %693 = vmatprep.subr.mxu0 0.0
    %694 = vmatpush2.msra.mxu0 0.0
    %695 = vmatprep.subr.mxu0 0.0
    %696 = vmatpush2.msra.mxu0 0.0
    %697 = vmatprep.subr.mxu0 0.0
    %698 = vmatpush2.msra.mxu0 0.0
    %699 = vmatprep.subr.mxu0 0.0
    %700 = vmatpush2.msra.mxu0 0.0
    %701 = vmatprep.subr.mxu0 0.0
    %702 = vmatpush2.msra.mxu0 0.0
    %703 = vmatprep.subr.mxu0 0.0
    %704 = vmatpush2.msra.mxu0 0.0
    %705 = vmatprep.subr.mxu0 0.0
    %706 = vmatpush2.msra.mxu0 0.0
    %707 = vmatprep.subr.mxu0 0.0
    %708 = vmatpush2.msra.mxu0 0.0
    %709 = vmatprep.subr.mxu0 0.0
    %710 = vmatpush2.msra.mxu0 0.0
    %711 = vmatprep.subr.mxu0 0.0
    %712 = vmatpush2.msra.mxu0 0.0
    %713 = vmatprep.mubr.f32.mxu0 0.0
    %714 = vmatmul.mubr.f32.gmra.mxu0 %v579
    %v715 = vpop.f32.mrf.mxu0
    %v716 = vadd.f32 0.0, %v715
    %v717 = vpop.f32.mrf.mxu0
    %v718 = vadd.f32 0.0, %v717
    %719 = vdwg.mxu0
    %720 = vmatprep.subr.mxu0 %v648
    %721 = vmatpush1.msra.mxu0 %v647
    %722 = vmatprep.subr.mxu0 %v644
    %723 = vmatpush1.msra.mxu0 %v643
    %724 = vmatprep.subr.mxu0 %v640
    %725 = vmatpush1.msra.mxu0 %v639
    %726 = vmatprep.subr.mxu0 %v636
    %727 = vmatpush1.msra.mxu0 %v635
    %728 = vmatprep.subr.mxu0 %v632
    %729 = vmatpush1.msra.mxu0 %v631
    %730 = vmatprep.subr.mxu0 %v628
    %731 = vmatpush1.msra.mxu0 %v627
    %732 = vmatprep.subr.mxu0 %v624
    %733 = vmatpush1.msra.mxu0 %v623
    %734 = vmatprep.subr.mxu0 %v620
    %735 = vmatpush1.msra.mxu0 %v619
    %736 = vmatprep.subr.mxu0 %v616
    %737 = vmatpush1.msra.mxu0 %v615
    %738 = vmatprep.subr.mxu0 %v612
    %739 = vmatpush1.msra.mxu0 %v611
    %740 = vmatprep.subr.mxu0 %v608
    %741 = vmatpush1.msra.mxu0 %v607
    %742 = vmatprep.subr.mxu0 %v604
    %743 = vmatpush1.msra.mxu0 %v603
    %744 = vmatprep.subr.mxu0 %v600
    %745 = vmatpush1.msra.mxu0 %v599
    %746 = vmatprep.subr.mxu0 %v596
    %747 = vmatpush1.msra.mxu0 %v595
    %748 = vmatprep.subr.mxu0 %v592
    %749 = vmatpush1.msra.mxu0 %v591
    %750 = vmatprep.subr.mxu0 %v588
    %751 = vmatpush1.msra.mxu0 %v587
    %752 = vmatprep.subr.mxu0 0.0
    %753 = vmatpush2.msra.mxu0 0.0
    %754 = vmatprep.subr.mxu0 0.0
    %755 = vmatpush2.msra.mxu0 0.0
    %756 = vmatprep.subr.mxu0 0.0
    %757 = vmatpush2.msra.mxu0 0.0
    %758 = vmatprep.subr.mxu0 0.0
    %759 = vmatpush2.msra.mxu0 0.0
    %760 = vmatprep.subr.mxu0 0.0
    %761 = vmatpush2.msra.mxu0 0.0
    %762 = vmatprep.subr.mxu0 0.0
    %763 = vmatpush2.msra.mxu0 0.0
    %764 = vmatprep.subr.mxu0 0.0
    %765 = vmatpush2.msra.mxu0 0.0
    %766 = vmatprep.subr.mxu0 0.0
    %767 = vmatpush2.msra.mxu0 0.0
    %768 = vmatprep.subr.mxu0 0.0
    %769 = vmatpush2.msra.mxu0 0.0
    %770 = vmatprep.subr.mxu0 0.0
    %771 = vmatpush2.msra.mxu0 0.0
    %772 = vmatprep.subr.mxu0 0.0
    %773 = vmatpush2.msra.mxu0 0.0
    %774 = vmatprep.subr.mxu0 0.0
    %775 = vmatpush2.msra.mxu0 0.0
    %776 = vmatprep.subr.mxu0 0.0
    %777 = vmatpush2.msra.mxu0 0.0
    %778 = vmatprep.subr.mxu0 0.0
    %779 = vmatpush2.msra.mxu0 0.0
    %780 = vmatprep.subr.mxu0 0.0
    %781 = vmatpush2.msra.mxu0 0.0
    %782 = vmatprep.subr.mxu0 0.0
    %783 = vmatpush2.msra.mxu0 0.0
    %784 = vmatprep.mubr.f32.mxu0 0.0
    %785 = vmatmul.mubr.f32.gmra.mxu0 %v579
    %v786 = vpop.f32.mrf.mxu0
    %v787 = vadd.f32 0.0, %v786
    %v788 = vpop.f32.mrf.mxu0
    %v789 = vadd.f32 0.0, %v788
    %790 = vdwg.mxu0
    %v791 = vadd.f32 %v581, %v716
    %v792 = vadd.f32 %v582, %v718
    %v793 = vadd.f32 %v583, %v787
    %v794 = vadd.f32 %v584, %v789
    %v795 = vxor.u32 %v791, 2147483648
    %v796 = vxor.u32 %v792, 2147483648
    %v797 = vxor.u32 %v793, 2147483648
    %v798 = vmul.f32 %v795, 1.442695
    %v799 = vpow.pop %v798
    %v800 = vmul.f32 %v796, 1.442695
    %v801 = vpow.pop %v800
    %v802 = vmul.f32 %v797, 1.442695
    %v803 = vpow.pop %v802
    %v804 = vadd.f32 %v799, 1.0
    %v805 = vadd.f32 %v801, 1.0
    %v806 = vadd.f32 %v803, 1.0
    %v807 = vrcp.pop %v804
    %v808 = vmul.f32 1.0, %v807
    %v809 = vrcp.pop %v805
    %v810 = vmul.f32 1.0, %v809
    %v811 = vrcp.pop %v806
    %v812 = vmul.f32 1.0, %v811
    %v813 = vtanh.pop %v794
    %v814 = vmul.f32 %v810, %v577
    %v815 = vmul.f32 %v808, %v813
    %v816 = vadd.f32 %v814, %v815
    %v817 = vtanh.pop %v816
    %v818 = vmul.f32 %v812, %v817
    %819 = vst [vmem:[#allocation3 + $0x8] sm:$0xff] %v818
    %v820 = vld [vmem:[#allocation2 + $0x40] sm:$0xff]
    %v821 = vld [vmem:[#allocation2 + $0x48] sm:$0xff]
    %v822 = vld [vmem:[#allocation2 + $0x50] sm:$0xff]
    %v823 = vld [vmem:[#allocation2 + $0x58] sm:$0xff]
    %v824 = vld [vmem:[#allocation4] sm:$0xff]
    %v825 = vld [vmem:[#allocation4 + $0x8] sm:$0xff]
    %v826 = vld [vmem:[#allocation4 + $0x10] sm:$0xff]
    %v827 = vld [vmem:[#allocation4 + $0x18] sm:$0xff]
    %v828 = vld [vmem:[#allocation4 + $0x20] sm:$0xff]
    %v829 = vld [vmem:[#allocation4 + $0x28] sm:$0xff]
    %v830 = vld [vmem:[#allocation4 + $0x30] sm:$0xff]
    %v831 = vld [vmem:[#allocation4 + $0x38] sm:$0xff]
    %v832 = vld [vmem:[#allocation4 + $0x40] sm:$0xff]
    %v833 = vld [vmem:[#allocation4 + $0x48] sm:$0xff]
    %v834 = vld [vmem:[#allocation4 + $0x50] sm:$0xff]
    %v835 = vld [vmem:[#allocation4 + $0x58] sm:$0xff]
    %v836 = vld [vmem:[#allocation4 + $0x60] sm:$0xff]
    %v837 = vld [vmem:[#allocation4 + $0x68] sm:$0xff]
    %v838 = vld [vmem:[#allocation4 + $0x70] sm:$0xff]
    %v839 = vld [vmem:[#allocation4 + $0x78] sm:$0xff]
    %v840 = vld [vmem:[#allocation4 + $0x80] sm:$0xff]
    %v841 = vld [vmem:[#allocation4 + $0x88] sm:$0xff]
    %v842 = vld [vmem:[#allocation4 + $0x90] sm:$0xff]
    %v843 = vld [vmem:[#allocation4 + $0x98] sm:$0xff]
    %v844 = vld [vmem:[#allocation4 + $0xa0] sm:$0xff]
    %v845 = vld [vmem:[#allocation4 + $0xa8] sm:$0xff]
    %v846 = vld [vmem:[#allocation4 + $0xb0] sm:$0xff]
    %v847 = vld [vmem:[#allocation4 + $0xb8] sm:$0xff]
    %v848 = vld [vmem:[#allocation4 + $0xc0] sm:$0xff]
    %v849 = vld [vmem:[#allocation4 + $0xc8] sm:$0xff]
    %v850 = vld [vmem:[#allocation4 + $0xd0] sm:$0xff]
    %v851 = vld [vmem:[#allocation4 + $0xd8] sm:$0xff]
    %v852 = vld [vmem:[#allocation4 + $0xe0] sm:$0xff]
    %v853 = vld [vmem:[#allocation4 + $0xe8] sm:$0xff]
    %v854 = vld [vmem:[#allocation4 + $0xf0] sm:$0xff]
    %v855 = vld [vmem:[#allocation4 + $0xf8] sm:$0xff]
    %v856 = vld [vmem:[#allocation4 + $0x100] sm:$0xff]
    %v857 = vld [vmem:[#allocation4 + $0x108] sm:$0xff]
    %v858 = vld [vmem:[#allocation4 + $0x110] sm:$0xff]
    %v859 = vld [vmem:[#allocation4 + $0x118] sm:$0xff]
    %v860 = vld [vmem:[#allocation4 + $0x120] sm:$0xff]
    %v861 = vld [vmem:[#allocation4 + $0x128] sm:$0xff]
    %v862 = vld [vmem:[#allocation4 + $0x130] sm:$0xff]
    %v863 = vld [vmem:[#allocation4 + $0x138] sm:$0xff]
    %v864 = vld [vmem:[#allocation4 + $0x140] sm:$0xff]
    %v865 = vld [vmem:[#allocation4 + $0x148] sm:$0xff]
    %v866 = vld [vmem:[#allocation4 + $0x150] sm:$0xff]
    %v867 = vld [vmem:[#allocation4 + $0x158] sm:$0xff]
    %v868 = vld [vmem:[#allocation4 + $0x160] sm:$0xff]
    %v869 = vld [vmem:[#allocation4 + $0x168] sm:$0xff]
    %v870 = vld [vmem:[#allocation4 + $0x170] sm:$0xff]
    %v871 = vld [vmem:[#allocation4 + $0x178] sm:$0xff]
    %v872 = vld [vmem:[#allocation4 + $0x180] sm:$0xff]
    %v873 = vld [vmem:[#allocation4 + $0x188] sm:$0xff]
    %v874 = vld [vmem:[#allocation4 + $0x190] sm:$0xff]
    %v875 = vld [vmem:[#allocation4 + $0x198] sm:$0xff]
    %v876 = vld [vmem:[#allocation4 + $0x1a0] sm:$0xff]
    %v877 = vld [vmem:[#allocation4 + $0x1a8] sm:$0xff]
    %v878 = vld [vmem:[#allocation4 + $0x1b0] sm:$0xff]
    %v879 = vld [vmem:[#allocation4 + $0x1b8] sm:$0xff]
    %v880 = vld [vmem:[#allocation4 + $0x1c0] sm:$0xff]
    %v881 = vld [vmem:[#allocation4 + $0x1c8] sm:$0xff]
    %v882 = vld [vmem:[#allocation4 + $0x1d0] sm:$0xff]
    %v883 = vld [vmem:[#allocation4 + $0x1d8] sm:$0xff]
    %v884 = vld [vmem:[#allocation4 + $0x1e0] sm:$0xff]
    %v885 = vld [vmem:[#allocation4 + $0x1e8] sm:$0xff]
    %v886 = vld [vmem:[#allocation4 + $0x1f0] sm:$0xff]
    %v887 = vld [vmem:[#allocation4 + $0x1f8] sm:$0xff]
    %888 = vmatprep.subr.mxu0 %v885
    %889 = vmatpush1.msra.mxu0 %v884
    %890 = vmatprep.subr.mxu0 %v881
    %891 = vmatpush1.msra.mxu0 %v880
    %892 = vmatprep.subr.mxu0 %v877
    %893 = vmatpush1.msra.mxu0 %v876
    %894 = vmatprep.subr.mxu0 %v873
    %895 = vmatpush1.msra.mxu0 %v872
    %896 = vmatprep.subr.mxu0 %v869
    %897 = vmatpush1.msra.mxu0 %v868
    %898 = vmatprep.subr.mxu0 %v865
    %899 = vmatpush1.msra.mxu0 %v864
    %900 = vmatprep.subr.mxu0 %v861
    %901 = vmatpush1.msra.mxu0 %v860
    %902 = vmatprep.subr.mxu0 %v857
    %903 = vmatpush1.msra.mxu0 %v856
    %904 = vmatprep.subr.mxu0 %v853
    %905 = vmatpush1.msra.mxu0 %v852
    %906 = vmatprep.subr.mxu0 %v849
    %907 = vmatpush1.msra.mxu0 %v848
    %908 = vmatprep.subr.mxu0 %v845
    %909 = vmatpush1.msra.mxu0 %v844
    %910 = vmatprep.subr.mxu0 %v841
    %911 = vmatpush1.msra.mxu0 %v840
    %912 = vmatprep.subr.mxu0 %v837
    %913 = vmatpush1.msra.mxu0 %v836
    %914 = vmatprep.subr.mxu0 %v833
    %915 = vmatpush1.msra.mxu0 %v832
    %916 = vmatprep.subr.mxu0 %v829
    %917 = vmatpush1.msra.mxu0 %v828
    %918 = vmatprep.subr.mxu0 %v825
    %919 = vmatpush1.msra.mxu0 %v824
    %920 = vmatprep.subr.mxu0 0.0
    %921 = vmatpush2.msra.mxu0 0.0
    %922 = vmatprep.subr.mxu0 0.0
    %923 = vmatpush2.msra.mxu0 0.0
    %924 = vmatprep.subr.mxu0 0.0
    %925 = vmatpush2.msra.mxu0 0.0
    %926 = vmatprep.subr.mxu0 0.0
    %927 = vmatpush2.msra.mxu0 0.0
    %928 = vmatprep.subr.mxu0 0.0
    %929 = vmatpush2.msra.mxu0 0.0
    %930 = vmatprep.subr.mxu0 0.0
    %931 = vmatpush2.msra.mxu0 0.0
    %932 = vmatprep.subr.mxu0 0.0
    %933 = vmatpush2.msra.mxu0 0.0
    %934 = vmatprep.subr.mxu0 0.0
    %935 = vmatpush2.msra.mxu0 0.0
    %936 = vmatprep.subr.mxu0 0.0
    %937 = vmatpush2.msra.mxu0 0.0
    %938 = vmatprep.subr.mxu0 0.0
    %939 = vmatpush2.msra.mxu0 0.0
    %940 = vmatprep.subr.mxu0 0.0
    %941 = vmatpush2.msra.mxu0 0.0
    %942 = vmatprep.subr.mxu0 0.0
    %943 = vmatpush2.msra.mxu0 0.0
    %944 = vmatprep.subr.mxu0 0.0
    %945 = vmatpush2.msra.mxu0 0.0
    %946 = vmatprep.subr.mxu0 0.0
    %947 = vmatpush2.msra.mxu0 0.0
    %948 = vmatprep.subr.mxu0 0.0
    %949 = vmatpush2.msra.mxu0 0.0
    %950 = vmatprep.subr.mxu0 0.0
    %951 = vmatpush2.msra.mxu0 0.0
    %952 = vmatprep.mubr.f32.mxu0 0.0
    %953 = vmatmul.mubr.f32.gmra.mxu0 %v818
    %v954 = vpop.f32.mrf.mxu0
    %v955 = vadd.f32 0.0, %v954
    %v956 = vpop.f32.mrf.mxu0
    %v957 = vadd.f32 0.0, %v956
    %958 = vdwg.mxu0
    %959 = vmatprep.subr.mxu0 %v887
    %960 = vmatpush1.msra.mxu0 %v886
    %961 = vmatprep.subr.mxu0 %v883
    %962 = vmatpush1.msra.mxu0 %v882
    %963 = vmatprep.subr.mxu0 %v879
    %964 = vmatpush1.msra.mxu0 %v878
    %965 = vmatprep.subr.mxu0 %v875
    %966 = vmatpush1.msra.mxu0 %v874
    %967 = vmatprep.subr.mxu0 %v871
    %968 = vmatpush1.msra.mxu0 %v870
    %969 = vmatprep.subr.mxu0 %v867
    %970 = vmatpush1.msra.mxu0 %v866
    %971 = vmatprep.subr.mxu0 %v863
    %972 = vmatpush1.msra.mxu0 %v862
    %973 = vmatprep.subr.mxu0 %v859
    %974 = vmatpush1.msra.mxu0 %v858
    %975 = vmatprep.subr.mxu0 %v855
    %976 = vmatpush1.msra.mxu0 %v854
    %977 = vmatprep.subr.mxu0 %v851
    %978 = vmatpush1.msra.mxu0 %v850
    %979 = vmatprep.subr.mxu0 %v847
    %980 = vmatpush1.msra.mxu0 %v846
    %981 = vmatprep.subr.mxu0 %v843
    %982 = vmatpush1.msra.mxu0 %v842
    %983 = vmatprep.subr.mxu0 %v839
    %984 = vmatpush1.msra.mxu0 %v838
    %985 = vmatprep.subr.mxu0 %v835
    %986 = vmatpush1.msra.mxu0 %v834
    %987 = vmatprep.subr.mxu0 %v831
    %988 = vmatpush1.msra.mxu0 %v830
    %989 = vmatprep.subr.mxu0 %v827
    %990 = vmatpush1.msra.mxu0 %v826
    %991 = vmatprep.subr.mxu0 0.0
    %992 = vmatpush2.msra.mxu0 0.0
    %993 = vmatprep.subr.mxu0 0.0
    %994 = vmatpush2.msra.mxu0 0.0
    %995 = vmatprep.subr.mxu0 0.0
    %996 = vmatpush2.msra.mxu0 0.0
    %997 = vmatprep.subr.mxu0 0.0
    %998 = vmatpush2.msra.mxu0 0.0
    %999 = vmatprep.subr.mxu0 0.0
    %1000 = vmatpush2.msra.mxu0 0.0
    %1001 = vmatprep.subr.mxu0 0.0
    %1002 = vmatpush2.msra.mxu0 0.0
    %1003 = vmatprep.subr.mxu0 0.0
    %1004 = vmatpush2.msra.mxu0 0.0
    %1005 = vmatprep.subr.mxu0 0.0
    %1006 = vmatpush2.msra.mxu0 0.0
    %1007 = vmatprep.subr.mxu0 0.0
    %1008 = vmatpush2.msra.mxu0 0.0
    %1009 = vmatprep.subr.mxu0 0.0
    %1010 = vmatpush2.msra.mxu0 0.0
    %1011 = vmatprep.subr.mxu0 0.0
    %1012 = vmatpush2.msra.mxu0 0.0
    %1013 = vmatprep.subr.mxu0 0.0
    %1014 = vmatpush2.msra.mxu0 0.0
    %1015 = vmatprep.subr.mxu0 0.0
    %1016 = vmatpush2.msra.mxu0 0.0
    %1017 = vmatprep.subr.mxu0 0.0
    %1018 = vmatpush2.msra.mxu0 0.0
    %1019 = vmatprep.subr.mxu0 0.0
    %1020 = vmatpush2.msra.mxu0 0.0
    %1021 = vmatprep.subr.mxu0 0.0
    %1022 = vmatpush2.msra.mxu0 0.0
    %1023 = vmatprep.mubr.f32.mxu0 0.0
    %1024 = vmatmul.mubr.f32.gmra.mxu0 %v818
    %v1025 = vpop.f32.mrf.mxu0
    %v1026 = vadd.f32 0.0, %v1025
    %v1027 = vpop.f32.mrf.mxu0
    %v1028 = vadd.f32 0.0, %v1027
    %1029 = vdwg.mxu0
    %v1030 = vadd.f32 %v820, %v955
    %v1031 = vadd.f32 %v821, %v957
    %v1032 = vadd.f32 %v822, %v1026
    %v1033 = vadd.f32 %v823, %v1028
    %v1034 = vxor.u32 %v1030, 2147483648
    %v1035 = vxor.u32 %v1031, 2147483648
    %v1036 = vxor.u32 %v1032, 2147483648
    %v1037 = vmul.f32 %v1034, 1.442695
    %v1038 = vpow.pop %v1037
    %v1039 = vmul.f32 %v1035, 1.442695
    %v1040 = vpow.pop %v1039
    %v1041 = vmul.f32 %v1036, 1.442695
    %v1042 = vpow.pop %v1041
    %v1043 = vadd.f32 %v1038, 1.0
    %v1044 = vadd.f32 %v1040, 1.0
    %v1045 = vadd.f32 %v1042, 1.0
    %v1046 = vrcp.pop %v1043
    %v1047 = vmul.f32 1.0, %v1046
    %v1048 = vrcp.pop %v1044
    %v1049 = vmul.f32 1.0, %v1048
    %v1050 = vrcp.pop %v1045
    %v1051 = vmul.f32 1.0, %v1050
    %v1052 = vtanh.pop %v1033
    %v1053 = vmul.f32 %v1049, %v816
    %v1054 = vmul.f32 %v1047, %v1052
    %v1055 = vadd.f32 %v1053, %v1054
    %v1056 = vtanh.pop %v1055
    %v1057 = vmul.f32 %v1051, %v1056
    %1058 = vst [vmem:[#allocation3 + $0x10] sm:$0xff] %v1057
    %v1059 = vld [vmem:[#allocation2 + $0x60] sm:$0xff]
    %v1060 = vld [vmem:[#allocation2 + $0x68] sm:$0xff]
    %v1061 = vld [vmem:[#allocation2 + $0x70] sm:$0xff]
    %v1062 = vld [vmem:[#allocation2 + $0x78] sm:$0xff]
    %v1063 = vld [vmem:[#allocation4] sm:$0xff]
    %v1064 = vld [vmem:[#allocation4 + $0x8] sm:$0xff]
    %v1065 = vld [vmem:[#allocation4 + $0x10] sm:$0xff]
    %v1066 = vld [vmem:[#allocation4 + $0x18] sm:$0xff]
    %v1067 = vld [vmem:[#allocation4 + $0x20] sm:$0xff]
    %v1068 = vld [vmem:[#allocation4 + $0x28] sm:$0xff]
    %v1069 = vld [vmem:[#allocation4 + $0x30] sm:$0xff]
    %v1070 = vld [vmem:[#allocation4 + $0x38] sm:$0xff]
    %v1071 = vld [vmem:[#allocation4 + $0x40] sm:$0xff]
    %v1072 = vld [vmem:[#allocation4 + $0x48] sm:$0xff]
    %v1073 = vld [vmem:[#allocation4 + $0x50] sm:$0xff]
    %v1074 = vld [vmem:[#allocation4 + $0x58] sm:$0xff]
    %v1075 = vld [vmem:[#allocation4 + $0x60] sm:$0xff]
    %v1076 = vld [vmem:[#allocation4 + $0x68] sm:$0xff]
    %v1077 = vld [vmem:[#allocation4 + $0x70] sm:$0xff]
    %v1078 = vld [vmem:[#allocation4 + $0x78] sm:$0xff]
    %v1079 = vld [vmem:[#allocation4 + $0x80] sm:$0xff]
    %v1080 = vld [vmem:[#allocation4 + $0x88] sm:$0xff]
    %v1081 = vld [vmem:[#allocation4 + $0x90] sm:$0xff]
    %v1082 = vld [vmem:[#allocation4 + $0x98] sm:$0xff]
    %v1083 = vld [vmem:[#allocation4 + $0xa0] sm:$0xff]
    %v1084 = vld [vmem:[#allocation4 + $0xa8] sm:$0xff]
    %v1085 = vld [vmem:[#allocation4 + $0xb0] sm:$0xff]
    %v1086 = vld [vmem:[#allocation4 + $0xb8] sm:$0xff]
    %v1087 = vld [vmem:[#allocation4 + $0xc0] sm:$0xff]
    %v1088 = vld [vmem:[#allocation4 + $0xc8] sm:$0xff]
    %v1089 = vld [vmem:[#allocation4 + $0xd0] sm:$0xff]
    %v1090 = vld [vmem:[#allocation4 + $0xd8] sm:$0xff]
    %v1091 = vld [vmem:[#allocation4 + $0xe0] sm:$0xff]
    %v1092 = vld [vmem:[#allocation4 + $0xe8] sm:$0xff]
    %v1093 = vld [vmem:[#allocation4 + $0xf0] sm:$0xff]
    %v1094 = vld [vmem:[#allocation4 + $0xf8] sm:$0xff]
    %v1095 = vld [vmem:[#allocation4 + $0x100] sm:$0xff]
    %v1096 = vld [vmem:[#allocation4 + $0x108] sm:$0xff]
    %v1097 = vld [vmem:[#allocation4 + $0x110] sm:$0xff]
    %v1098 = vld [vmem:[#allocation4 + $0x118] sm:$0xff]
    %v1099 = vld [vmem:[#allocation4 + $0x120] sm:$0xff]
    %v1100 = vld [vmem:[#allocation4 + $0x128] sm:$0xff]
    %v1101 = vld [vmem:[#allocation4 + $0x130] sm:$0xff]
    %v1102 = vld [vmem:[#allocation4 + $0x138] sm:$0xff]
    %v1103 = vld [vmem:[#allocation4 + $0x140] sm:$0xff]
    %v1104 = vld [vmem:[#allocation4 + $0x148] sm:$0xff]
    %v1105 = vld [vmem:[#allocation4 + $0x150] sm:$0xff]
    %v1106 = vld [vmem:[#allocation4 + $0x158] sm:$0xff]
    %v1107 = vld [vmem:[#allocation4 + $0x160] sm:$0xff]
    %v1108 = vld [vmem:[#allocation4 + $0x168] sm:$0xff]
    %v1109 = vld [vmem:[#allocation4 + $0x170] sm:$0xff]
    %v1110 = vld [vmem:[#allocation4 + $0x178] sm:$0xff]
    %v1111 = vld [vmem:[#allocation4 + $0x180] sm:$0xff]
    %v1112 = vld [vmem:[#allocation4 + $0x188] sm:$0xff]
    %v1113 = vld [vmem:[#allocation4 + $0x190] sm:$0xff]
    %v1114 = vld [vmem:[#allocation4 + $0x198] sm:$0xff]
    %v1115 = vld [vmem:[#allocation4 + $0x1a0] sm:$0xff]
    %v1116 = vld [vmem:[#allocation4 + $0x1a8] sm:$0xff]
    %v1117 = vld [vmem:[#allocation4 + $0x1b0] sm:$0xff]
    %v1118 = vld [vmem:[#allocation4 + $0x1b8] sm:$0xff]
    %v1119 = vld [vmem:[#allocation4 + $0x1c0] sm:$0xff]
    %v1120 = vld [vmem:[#allocation4 + $0x1c8] sm:$0xff]
    %v1121 = vld [vmem:[#allocation4 + $0x1d0] sm:$0xff]
    %v1122 = vld [vmem:[#allocation4 + $0x1d8] sm:$0xff]
    %v1123 = vld [vmem:[#allocation4 + $0x1e0] sm:$0xff]
    %v1124 = vld [vmem:[#allocation4 + $0x1e8] sm:$0xff]
    %v1125 = vld [vmem:[#allocation4 + $0x1f0] sm:$0xff]
    %v1126 = vld [vmem:[#allocation4 + $0x1f8] sm:$0xff]
    %1127 = vmatprep.subr.mxu0 %v1124
    %1128 = vmatpush1.msra.mxu0 %v1123
    %1129 = vmatprep.subr.mxu0 %v1120
    %1130 = vmatpush1.msra.mxu0 %v1119
    %1131 = vmatprep.subr.mxu0 %v1116
    %1132 = vmatpush1.msra.mxu0 %v1115
    %1133 = vmatprep.subr.mxu0 %v1112
    %1134 = vmatpush1.msra.mxu0 %v1111
    %1135 = vmatprep.subr.mxu0 %v1108
    %1136 = vmatpush1.msra.mxu0 %v1107
    %1137 = vmatprep.subr.mxu0 %v1104
    %1138 = vmatpush1.msra.mxu0 %v1103
    %1139 = vmatprep.subr.mxu0 %v1100
    %1140 = vmatpush1.msra.mxu0 %v1099
    %1141 = vmatprep.subr.mxu0 %v1096
    %1142 = vmatpush1.msra.mxu0 %v1095
    %1143 = vmatprep.subr.mxu0 %v1092
    %1144 = vmatpush1.msra.mxu0 %v1091
    %1145 = vmatprep.subr.mxu0 %v1088
    %1146 = vmatpush1.msra.mxu0 %v1087
    %1147 = vmatprep.subr.mxu0 %v1084
    %1148 = vmatpush1.msra.mxu0 %v1083
    %1149 = vmatprep.subr.mxu0 %v1080
    %1150 = vmatpush1.msra.mxu0 %v1079
    %1151 = vmatprep.subr.mxu0 %v1076
    %1152 = vmatpush1.msra.mxu0 %v1075
    %1153 = vmatprep.subr.mxu0 %v1072
    %1154 = vmatpush1.msra.mxu0 %v1071
    %1155 = vmatprep.subr.mxu0 %v1068
    %1156 = vmatpush1.msra.mxu0 %v1067
    %1157 = vmatprep.subr.mxu0 %v1064
    %1158 = vmatpush1.msra.mxu0 %v1063
    %1159 = vmatprep.subr.mxu0 0.0
    %1160 = vmatpush2.msra.mxu0 0.0
    %1161 = vmatprep.subr.mxu0 0.0
    %1162 = vmatpush2.msra.mxu0 0.0
    %1163 = vmatprep.subr.mxu0 0.0
    %1164 = vmatpush2.msra.mxu0 0.0
    %1165 = vmatprep.subr.mxu0 0.0
    %1166 = vmatpush2.msra.mxu0 0.0
    %1167 = vmatprep.subr.mxu0 0.0
    %1168 = vmatpush2.msra.mxu0 0.0
    %1169 = vmatprep.subr.mxu0 0.0
    %1170 = vmatpush2.msra.mxu0 0.0
    %1171 = vmatprep.subr.mxu0 0.0
    %1172 = vmatpush2.msra.mxu0 0.0
    %1173 = vmatprep.subr.mxu0 0.0
    %1174 = vmatpush2.msra.mxu0 0.0
    %1175 = vmatprep.subr.mxu0 0.0
    %1176 = vmatpush2.msra.mxu0 0.0
    %1177 = vmatprep.subr.mxu0 0.0
    %1178 = vmatpush2.msra.mxu0 0.0
    %1179 = vmatprep.subr.mxu0 0.0
    %1180 = vmatpush2.msra.mxu0 0.0
    %1181 = vmatprep.subr.mxu0 0.0
    %1182 = vmatpush2.msra.mxu0 0.0
    %1183 = vmatprep.subr.mxu0 0.0
    %1184 = vmatpush2.msra.mxu0 0.0
    %1185 = vmatprep.subr.mxu0 0.0
    %1186 = vmatpush2.msra.mxu0 0.0
    %1187 = vmatprep.subr.mxu0 0.0
    %1188 = vmatpush2.msra.mxu0 0.0
    %1189 = vmatprep.subr.mxu0 0.0
    %1190 = vmatpush2.msra.mxu0 0.0
    %1191 = vmatprep.mubr.f32.mxu0 0.0
    %1192 = vmatmul.mubr.f32.gmra.mxu0 %v1057
    %v1193 = vpop.f32.mrf.mxu0
    %v1194 = vadd.f32 0.0, %v1193
    %v1195 = vpop.f32.mrf.mxu0
    %v1196 = vadd.f32 0.0, %v1195
    %1197 = vdwg.mxu0
    %1198 = vmatprep.subr.mxu0 %v1126
    %1199 = vmatpush1.msra.mxu0 %v1125
    %1200 = vmatprep.subr.mxu0 %v1122
    %1201 = vmatpush1.msra.mxu0 %v1121
    %1202 = vmatprep.subr.mxu0 %v1118
    %1203 = vmatpush1.msra.mxu0 %v1117
    %1204 = vmatprep.subr.mxu0 %v1114
    %1205 = vmatpush1.msra.mxu0 %v1113
    %1206 = vmatprep.subr.mxu0 %v1110
    %1207 = vmatpush1.msra.mxu0 %v1109
    %1208 = vmatprep.subr.mxu0 %v1106
    %1209 = vmatpush1.msra.mxu0 %v1105
    %1210 = vmatprep.subr.mxu0 %v1102
    %1211 = vmatpush1.msra.mxu0 %v1101
    %1212 = vmatprep.subr.mxu0 %v1098
    %1213 = vmatpush1.msra.mxu0 %v1097
    %1214 = vmatprep.subr.mxu0 %v1094
    %1215 = vmatpush1.msra.mxu0 %v1093
    %1216 = vmatprep.subr.mxu0 %v1090
    %1217 = vmatpush1.msra.mxu0 %v1089
    %1218 = vmatprep.subr.mxu0 %v1086
    %1219 = vmatpush1.msra.mxu0 %v1085
    %1220 = vmatprep.subr.mxu0 %v1082
    %1221 = vmatpush1.msra.mxu0 %v1081
    %1222 = vmatprep.subr.mxu0 %v1078
    %1223 = vmatpush1.msra.mxu0 %v1077
    %1224 = vmatprep.subr.mxu0 %v1074
    %1225 = vmatpush1.msra.mxu0 %v1073
    %1226 = vmatprep.subr.mxu0 %v1070
    %1227 = vmatpush1.msra.mxu0 %v1069
    %1228 = vmatprep.subr.mxu0 %v1066
    %1229 = vmatpush1.msra.mxu0 %v1065
    %1230 = vmatprep.subr.mxu0 0.0
    %1231 = vmatpush2.msra.mxu0 0.0
    %1232 = vmatprep.subr.mxu0 0.0
    %1233 = vmatpush2.msra.mxu0 0.0
    %1234 = vmatprep.subr.mxu0 0.0
    %1235 = vmatpush2.msra.mxu0 0.0
    %1236 = vmatprep.subr.mxu0 0.0
    %1237 = vmatpush2.msra.mxu0 0.0
    %1238 = vmatprep.subr.mxu0 0.0
    %1239 = vmatpush2.msra.mxu0 0.0
    %1240 = vmatprep.subr.mxu0 0.0
    %1241 = vmatpush2.msra.mxu0 0.0
    %1242 = vmatprep.subr.mxu0 0.0
    %1243 = vmatpush2.msra.mxu0 0.0
    %1244 = vmatprep.subr.mxu0 0.0
    %1245 = vmatpush2.msra.mxu0 0.0
    %1246 = vmatprep.subr.mxu0 0.0
    %1247 = vmatpush2.msra.mxu0 0.0
    %1248 = vmatprep.subr.mxu0 0.0
    %1249 = vmatpush2.msra.mxu0 0.0
    %1250 = vmatprep.subr.mxu0 0.0
    %1251 = vmatpush2.msra.mxu0 0.0
    %1252 = vmatprep.subr.mxu0 0.0
    %1253 = vmatpush2.msra.mxu0 0.0
    %1254 = vmatprep.subr.mxu0 0.0
    %1255 = vmatpush2.msra.mxu0 0.0
    %1256 = vmatprep.subr.mxu0 0.0
    %1257 = vmatpush2.msra.mxu0 0.0
    %1258 = vmatprep.subr.mxu0 0.0
    %1259 = vmatpush2.msra.mxu0 0.0
    %1260 = vmatprep.subr.mxu0 0.0
    %1261 = vmatpush2.msra.mxu0 0.0
    %1262 = vmatprep.mubr.f32.mxu0 0.0
    %1263 = vmatmul.mubr.f32.gmra.mxu0 %v1057
    %v1264 = vpop.f32.mrf.mxu0
    %v1265 = vadd.f32 0.0, %v1264
    %v1266 = vpop.f32.mrf.mxu0
    %v1267 = vadd.f32 0.0, %v1266
    %1268 = vdwg.mxu0
    %v1269 = vadd.f32 %v1059, %v1194
    %v1270 = vadd.f32 %v1060, %v1196
    %v1271 = vadd.f32 %v1061, %v1265
    %v1272 = vadd.f32 %v1062, %v1267
    %v1273 = vxor.u32 %v1269, 2147483648
    %v1274 = vxor.u32 %v1270, 2147483648
    %v1275 = vxor.u32 %v1271, 2147483648
    %v1276 = vmul.f32 %v1273, 1.442695
    %v1277 = vpow.pop %v1276
    %v1278 = vmul.f32 %v1274, 1.442695
    %v1279 = vpow.pop %v1278
    %v1280 = vmul.f32 %v1275, 1.442695
    %v1281 = vpow.pop %v1280
    %v1282 = vadd.f32 %v1277, 1.0
    %v1283 = vadd.f32 %v1279, 1.0
    %v1284 = vadd.f32 %v1281, 1.0
    %v1285 = vrcp.pop %v1282
    %v1286 = vmul.f32 1.0, %v1285
    %v1287 = vrcp.pop %v1283
    %v1288 = vmul.f32 1.0, %v1287
    %v1289 = vrcp.pop %v1284
    %v1290 = vmul.f32 1.0, %v1289
    %v1291 = vtanh.pop %v1272
    %v1292 = vmul.f32 %v1288, %v1055
    %v1293 = vmul.f32 %v1286, %v1291
    %v1294 = vadd.f32 %v1292, %v1293
    %v1295 = vtanh.pop %v1294
    %v1296 = vmul.f32 %v1290, %v1295
    %1297 = vst [vmem:[#allocation3 + $0x18] sm:$0xff] %v1296
    %v1298 = vld [vmem:[#allocation2 + $0x80] sm:$0xff]
    %v1299 = vld [vmem:[#allocation2 + $0x88] sm:$0xff]
    %v1300 = vld [vmem:[#allocation2 + $0x90] sm:$0xff]
    %v1301 = vld [vmem:[#allocation2 + $0x98] sm:$0xff]
    %v1302 = vld [vmem:[#allocation4] sm:$0xff]
    %v1303 = vld [vmem:[#allocation4 + $0x8] sm:$0xff]
    %v1304 = vld [vmem:[#allocation4 + $0x10] sm:$0xff]
    %v1305 = vld [vmem:[#allocation4 + $0x18] sm:$0xff]
    %v1306 = vld [vmem:[#allocation4 + $0x20] sm:$0xff]
    %v1307 = vld [vmem:[#allocation4 + $0x28] sm:$0xff]
    %v1308 = vld [vmem:[#allocation4 + $0x30] sm:$0xff]
    %v1309 = vld [vmem:[#allocation4 + $0x38] sm:$0xff]
    %v1310 = vld [vmem:[#allocation4 + $0x40] sm:$0xff]
    %v1311 = vld [vmem:[#allocation4 + $0x48] sm:$0xff]
    %v1312 = vld [vmem:[#allocation4 + $0x50] sm:$0xff]
    %v1313 = vld [vmem:[#allocation4 + $0x58] sm:$0xff]
    %v1314 = vld [vmem:[#allocation4 + $0x60] sm:$0xff]
    %v1315 = vld [vmem:[#allocation4 + $0x68] sm:$0xff]
    %v1316 = vld [vmem:[#allocation4 + $0x70] sm:$0xff]
    %v1317 = vld [vmem:[#allocation4 + $0x78] sm:$0xff]
    %v1318 = vld [vmem:[#allocation4 + $0x80] sm:$0xff]
    %v1319 = vld [vmem:[#allocation4 + $0x88] sm:$0xff]
    %v1320 = vld [vmem:[#allocation4 + $0x90] sm:$0xff]
    %v1321 = vld [vmem:[#allocation4 + $0x98] sm:$0xff]
    %v1322 = vld [vmem:[#allocation4 + $0xa0] sm:$0xff]
    %v1323 = vld [vmem:[#allocation4 + $0xa8] sm:$0xff]
    %v1324 = vld [vmem:[#allocation4 + $0xb0] sm:$0xff]
    %v1325 = vld [vmem:[#allocation4 + $0xb8] sm:$0xff]
    %v1326 = vld [vmem:[#allocation4 + $0xc0] sm:$0xff]
    %v1327 = vld [vmem:[#allocation4 + $0xc8] sm:$0xff]
    %v1328 = vld [vmem:[#allocation4 + $0xd0] sm:$0xff]
    %v1329 = vld [vmem:[#allocation4 + $0xd8] sm:$0xff]
    %v1330 = vld [vmem:[#allocation4 + $0xe0] sm:$0xff]
    %v1331 = vld [vmem:[#allocation4 + $0xe8] sm:$0xff]
    %v1332 = vld [vmem:[#allocation4 + $0xf0] sm:$0xff]
    %v1333 = vld [vmem:[#allocation4 + $0xf8] sm:$0xff]
    %v1334 = vld [vmem:[#allocation4 + $0x100] sm:$0xff]
    %v1335 = vld [vmem:[#allocation4 + $0x108] sm:$0xff]
    %v1336 = vld [vmem:[#allocation4 + $0x110] sm:$0xff]
    %v1337 = vld [vmem:[#allocation4 + $0x118] sm:$0xff]
    %v1338 = vld [vmem:[#allocation4 + $0x120] sm:$0xff]
    %v1339 = vld [vmem:[#allocation4 + $0x128] sm:$0xff]
    %v1340 = vld [vmem:[#allocation4 + $0x130] sm:$0xff]
    %v1341 = vld [vmem:[#allocation4 + $0x138] sm:$0xff]
    %v1342 = vld [vmem:[#allocation4 + $0x140] sm:$0xff]
    %v1343 = vld [vmem:[#allocation4 + $0x148] sm:$0xff]
    %v1344 = vld [vmem:[#allocation4 + $0x150] sm:$0xff]
    %v1345 = vld [vmem:[#allocation4 + $0x158] sm:$0xff]
    %v1346 = vld [vmem:[#allocation4 + $0x160] sm:$0xff]
    %v1347 = vld [vmem:[#allocation4 + $0x168] sm:$0xff]
    %v1348 = vld [vmem:[#allocation4 + $0x170] sm:$0xff]
    %v1349 = vld [vmem:[#allocation4 + $0x178] sm:$0xff]
    %v1350 = vld [vmem:[#allocation4 + $0x180] sm:$0xff]
    %v1351 = vld [vmem:[#allocation4 + $0x188] sm:$0xff]
    %v1352 = vld [vmem:[#allocation4 + $0x190] sm:$0xff]
    %v1353 = vld [vmem:[#allocation4 + $0x198] sm:$0xff]
    %v1354 = vld [vmem:[#allocation4 + $0x1a0] sm:$0xff]
    %v1355 = vld [vmem:[#allocation4 + $0x1a8] sm:$0xff]
    %v1356 = vld [vmem:[#allocation4 + $0x1b0] sm:$0xff]
    %v1357 = vld [vmem:[#allocation4 + $0x1b8] sm:$0xff]
    %v1358 = vld [vmem:[#allocation4 + $0x1c0] sm:$0xff]
    %v1359 = vld [vmem:[#allocation4 + $0x1c8] sm:$0xff]
    %v1360 = vld [vmem:[#allocation4 + $0x1d0] sm:$0xff]
    %v1361 = vld [vmem:[#allocation4 + $0x1d8] sm:$0xff]
    %v1362 = vld [vmem:[#allocation4 + $0x1e0] sm:$0xff]
    %v1363 = vld [vmem:[#allocation4 + $0x1e8] sm:$0xff]
    %v1364 = vld [vmem:[#allocation4 + $0x1f0] sm:$0xff]
    %v1365 = vld [vmem:[#allocation4 + $0x1f8] sm:$0xff]
    %1366 = vmatprep.subr.mxu0 %v1363
    %1367 = vmatpush1.msra.mxu0 %v1362
    %1368 = vmatprep.subr.mxu0 %v1359
    %1369 = vmatpush1.msra.mxu0 %v1358
    %1370 = vmatprep.subr.mxu0 %v1355
    %1371 = vmatpush1.msra.mxu0 %v1354
    %1372 = vmatprep.subr.mxu0 %v1351
    %1373 = vmatpush1.msra.mxu0 %v1350
    %1374 = vmatprep.subr.mxu0 %v1347
    %1375 = vmatpush1.msra.mxu0 %v1346
    %1376 = vmatprep.subr.mxu0 %v1343
    %1377 = vmatpush1.msra.mxu0 %v1342
    %1378 = vmatprep.subr.mxu0 %v1339
    %1379 = vmatpush1.msra.mxu0 %v1338
    %1380 = vmatprep.subr.mxu0 %v1335
    %1381 = vmatpush1.msra.mxu0 %v1334
    %1382 = vmatprep.subr.mxu0 %v1331
    %1383 = vmatpush1.msra.mxu0 %v1330
    %1384 = vmatprep.subr.mxu0 %v1327
    %1385 = vmatpush1.msra.mxu0 %v1326
    %1386 = vmatprep.subr.mxu0 %v1323
    %1387 = vmatpush1.msra.mxu0 %v1322
    %1388 = vmatprep.subr.mxu0 %v1319
    %1389 = vmatpush1.msra.mxu0 %v1318
    %1390 = vmatprep.subr.mxu0 %v1315
    %1391 = vmatpush1.msra.mxu0 %v1314
    %1392 = vmatprep.subr.mxu0 %v1311
    %1393 = vmatpush1.msra.mxu0 %v1310
    %1394 = vmatprep.subr.mxu0 %v1307
    %1395 = vmatpush1.msra.mxu0 %v1306
    %1396 = vmatprep.subr.mxu0 %v1303
    %1397 = vmatpush1.msra.mxu0 %v1302
    %1398 = vmatprep.subr.mxu0 0.0
    %1399 = vmatpush2.msra.mxu0 0.0
    %1400 = vmatprep.subr.mxu0 0.0
    %1401 = vmatpush2.msra.mxu0 0.0
    %1402 = vmatprep.subr.mxu0 0.0
    %1403 = vmatpush2.msra.mxu0 0.0
    %1404 = vmatprep.subr.mxu0 0.0
    %1405 = vmatpush2.msra.mxu0 0.0
    %1406 = vmatprep.subr.mxu0 0.0
    %1407 = vmatpush2.msra.mxu0 0.0
    %1408 = vmatprep.subr.mxu0 0.0
    %1409 = vmatpush2.msra.mxu0 0.0
    %1410 = vmatprep.subr.mxu0 0.0
    %1411 = vmatpush2.msra.mxu0 0.0
    %1412 = vmatprep.subr.mxu0 0.0
    %1413 = vmatpush2.msra.mxu0 0.0
    %1414 = vmatprep.subr.mxu0 0.0
    %1415 = vmatpush2.msra.mxu0 0.0
    %1416 = vmatprep.subr.mxu0 0.0
    %1417 = vmatpush2.msra.mxu0 0.0
    %1418 = vmatprep.subr.mxu0 0.0
    %1419 = vmatpush2.msra.mxu0 0.0
    %1420 = vmatprep.subr.mxu0 0.0
    %1421 = vmatpush2.msra.mxu0 0.0
    %1422 = vmatprep.subr.mxu0 0.0
    %1423 = vmatpush2.msra.mxu0 0.0
    %1424 = vmatprep.subr.mxu0 0.0
    %1425 = vmatpush2.msra.mxu0 0.0
    %1426 = vmatprep.subr.mxu0 0.0
    %1427 = vmatpush2.msra.mxu0 0.0
    %1428 = vmatprep.subr.mxu0 0.0
    %1429 = vmatpush2.msra.mxu0 0.0
    %1430 = vmatprep.mubr.f32.mxu0 0.0
    %1431 = vmatmul.mubr.f32.gmra.mxu0 %v1296
    %v1432 = vpop.f32.mrf.mxu0
    %v1433 = vadd.f32 0.0, %v1432
    %v1434 = vpop.f32.mrf.mxu0
    %v1435 = vadd.f32 0.0, %v1434
    %1436 = vdwg.mxu0
    %1437 = vmatprep.subr.mxu0 %v1365
    %1438 = vmatpush1.msra.mxu0 %v1364
    %1439 = vmatprep.subr.mxu0 %v1361
    %1440 = vmatpush1.msra.mxu0 %v1360
    %1441 = vmatprep.subr.mxu0 %v1357
    %1442 = vmatpush1.msra.mxu0 %v1356
    %1443 = vmatprep.subr.mxu0 %v1353
    %1444 = vmatpush1.msra.mxu0 %v1352
    %1445 = vmatprep.subr.mxu0 %v1349
    %1446 = vmatpush1.msra.mxu0 %v1348
    %1447 = vmatprep.subr.mxu0 %v1345
    %1448 = vmatpush1.msra.mxu0 %v1344
    %1449 = vmatprep.subr.mxu0 %v1341
    %1450 = vmatpush1.msra.mxu0 %v1340
    %1451 = vmatprep.subr.mxu0 %v1337
    %1452 = vmatpush1.msra.mxu0 %v1336
    %1453 = vmatprep.subr.mxu0 %v1333
    %1454 = vmatpush1.msra.mxu0 %v1332
    %1455 = vmatprep.subr.mxu0 %v1329
    %1456 = vmatpush1.msra.mxu0 %v1328
    %1457 = vmatprep.subr.mxu0 %v1325
    %1458 = vmatpush1.msra.mxu0 %v1324
    %1459 = vmatprep.subr.mxu0 %v1321
    %1460 = vmatpush1.msra.mxu0 %v1320
    %1461 = vmatprep.subr.mxu0 %v1317
    %1462 = vmatpush1.msra.mxu0 %v1316
    %1463 = vmatprep.subr.mxu0 %v1313
    %1464 = vmatpush1.msra.mxu0 %v1312
    %1465 = vmatprep.subr.mxu0 %v1309
    %1466 = vmatpush1.msra.mxu0 %v1308
    %1467 = vmatprep.subr.mxu0 %v1305
    %1468 = vmatpush1.msra.mxu0 %v1304
    %1469 = vmatprep.subr.mxu0 0.0
    %1470 = vmatpush2.msra.mxu0 0.0
    %1471 = vmatprep.subr.mxu0 0.0
    %1472 = vmatpush2.msra.mxu0 0.0
    %1473 = vmatprep.subr.mxu0 0.0
    %1474 = vmatpush2.msra.mxu0 0.0
    %1475 = vmatprep.subr.mxu0 0.0
    %1476 = vmatpush2.msra.mxu0 0.0
    %1477 = vmatprep.subr.mxu0 0.0
    %1478 = vmatpush2.msra.mxu0 0.0
    %1479 = vmatprep.subr.mxu0 0.0
    %1480 = vmatpush2.msra.mxu0 0.0
    %1481 = vmatprep.subr.mxu0 0.0
    %1482 = vmatpush2.msra.mxu0 0.0
    %1483 = vmatprep.subr.mxu0 0.0
    %1484 = vmatpush2.msra.mxu0 0.0
    %1485 = vmatprep.subr.mxu0 0.0
    %1486 = vmatpush2.msra.mxu0 0.0
    %1487 = vmatprep.subr.mxu0 0.0
    %1488 = vmatpush2.msra.mxu0 0.0
    %1489 = vmatprep.subr.mxu0 0.0
    %1490 = vmatpush2.msra.mxu0 0.0
    %1491 = vmatprep.subr.mxu0 0.0
    %1492 = vmatpush2.msra.mxu0 0.0
    %1493 = vmatprep.subr.mxu0 0.0
    %1494 = vmatpush2.msra.mxu0 0.0
    %1495 = vmatprep.subr.mxu0 0.0
    %1496 = vmatpush2.msra.mxu0 0.0
    %1497 = vmatprep.subr.mxu0 0.0
    %1498 = vmatpush2.msra.mxu0 0.0
    %1499 = vmatprep.subr.mxu0 0.0
    %1500 = vmatpush2.msra.mxu0 0.0
    %1501 = vmatprep.mubr.f32.mxu0 0.0
    %1502 = vmatmul.mubr.f32.gmra.mxu0 %v1296
    %v1503 = vpop.f32.mrf.mxu0
    %v1504 = vadd.f32 0.0, %v1503
    %v1505 = vpop.f32.mrf.mxu0
    %v1506 = vadd.f32 0.0, %v1505
    %1507 = vdwg.mxu0
    %v1508 = vadd.f32 %v1298, %v1433
    %v1509 = vadd.f32 %v1299, %v1435
    %v1510 = vadd.f32 %v1300, %v1504
    %v1511 = vadd.f32 %v1301, %v1506
    %v1512 = vxor.u32 %v1508, 2147483648
    %v1513 = vxor.u32 %v1509, 2147483648
    %v1514 = vxor.u32 %v1510, 2147483648
    %v1515 = vmul.f32 %v1512, 1.442695
    %v1516 = vpow.pop %v1515
    %v1517 = vmul.f32 %v1513, 1.442695
    %v1518 = vpow.pop %v1517
    %v1519 = vmul.f32 %v1514, 1.442695
    %v1520 = vpow.pop %v1519
    %v1521 = vadd.f32 %v1516, 1.0
    %v1522 = vadd.f32 %v1518, 1.0
    %v1523 = vadd.f32 %v1520, 1.0
    %v1524 = vrcp.pop %v1521
    %v1525 = vmul.f32 1.0, %v1524
    %v1526 = vrcp.pop %v1522
    %v1527 = vmul.f32 1.0, %v1526
    %v1528 = vrcp.pop %v1523
    %v1529 = vmul.f32 1.0, %v1528
    %v1530 = vtanh.pop %v1511
    %v1531 = vmul.f32 %v1527, %v1294
    %v1532 = vmul.f32 %v1525, %v1530
    %v1533 = vadd.f32 %v1531, %v1532
    %v1534 = vtanh.pop %v1533
    %v1535 = vmul.f32 %v1529, %v1534
    %1536 = vst [vmem:[#allocation3 + $0x20] sm:$0xff] %v1535
    %v1537 = vld [vmem:[#allocation2 + $0xa0] sm:$0xff]
    %v1538 = vld [vmem:[#allocation2 + $0xa8] sm:$0xff]
    %v1539 = vld [vmem:[#allocation2 + $0xb0] sm:$0xff]
    %v1540 = vld [vmem:[#allocation2 + $0xb8] sm:$0xff]
    %v1541 = vld [vmem:[#allocation4] sm:$0xff]
    %v1542 = vld [vmem:[#allocation4 + $0x8] sm:$0xff]
    %v1543 = vld [vmem:[#allocation4 + $0x10] sm:$0xff]
    %v1544 = vld [vmem:[#allocation4 + $0x18] sm:$0xff]
    %v1545 = vld [vmem:[#allocation4 + $0x20] sm:$0xff]
    %v1546 = vld [vmem:[#allocation4 + $0x28] sm:$0xff]
    %v1547 = vld [vmem:[#allocation4 + $0x30] sm:$0xff]
    %v1548 = vld [vmem:[#allocation4 + $0x38] sm:$0xff]
    %v1549 = vld [vmem:[#allocation4 + $0x40] sm:$0xff]
    %v1550 = vld [vmem:[#allocation4 + $0x48] sm:$0xff]
    %v1551 = vld [vmem:[#allocation4 + $0x50] sm:$0xff]
    %v1552 = vld [vmem:[#allocation4 + $0x58] sm:$0xff]
    %v1553 = vld [vmem:[#allocation4 + $0x60] sm:$0xff]
    %v1554 = vld [vmem:[#allocation4 + $0x68] sm:$0xff]
    %v1555 = vld [vmem:[#allocation4 + $0x70] sm:$0xff]
    %v1556 = vld [vmem:[#allocation4 + $0x78] sm:$0xff]
    %v1557 = vld [vmem:[#allocation4 + $0x80] sm:$0xff]
    %v1558 = vld [vmem:[#allocation4 + $0x88] sm:$0xff]
    %v1559 = vld [vmem:[#allocation4 + $0x90] sm:$0xff]
    %v1560 = vld [vmem:[#allocation4 + $0x98] sm:$0xff]
    %v1561 = vld [vmem:[#allocation4 + $0xa0] sm:$0xff]
    %v1562 = vld [vmem:[#allocation4 + $0xa8] sm:$0xff]
    %v1563 = vld [vmem:[#allocation4 + $0xb0] sm:$0xff]
    %v1564 = vld [vmem:[#allocation4 + $0xb8] sm:$0xff]
    %v1565 = vld [vmem:[#allocation4 + $0xc0] sm:$0xff]
    %v1566 = vld [vmem:[#allocation4 + $0xc8] sm:$0xff]
    %v1567 = vld [vmem:[#allocation4 + $0xd0] sm:$0xff]
    %v1568 = vld [vmem:[#allocation4 + $0xd8] sm:$0xff]
    %v1569 = vld [vmem:[#allocation4 + $0xe0] sm:$0xff]
    %v1570 = vld [vmem:[#allocation4 + $0xe8] sm:$0xff]
    %v1571 = vld [vmem:[#allocation4 + $0xf0] sm:$0xff]
    %v1572 = vld [vmem:[#allocation4 + $0xf8] sm:$0xff]
    %v1573 = vld [vmem:[#allocation4 + $0x100] sm:$0xff]
    %v1574 = vld [vmem:[#allocation4 + $0x108] sm:$0xff]
    %v1575 = vld [vmem:[#allocation4 + $0x110] sm:$0xff]
    %v1576 = vld [vmem:[#allocation4 + $0x118] sm:$0xff]
    %v1577 = vld [vmem:[#allocation4 + $0x120] sm:$0xff]
    %v1578 = vld [vmem:[#allocation4 + $0x128] sm:$0xff]
    %v1579 = vld [vmem:[#allocation4 + $0x130] sm:$0xff]
    %v1580 = vld [vmem:[#allocation4 + $0x138] sm:$0xff]
    %v1581 = vld [vmem:[#allocation4 + $0x140] sm:$0xff]
    %v1582 = vld [vmem:[#allocation4 + $0x148] sm:$0xff]
    %v1583 = vld [vmem:[#allocation4 + $0x150] sm:$0xff]
    %v1584 = vld [vmem:[#allocation4 + $0x158] sm:$0xff]
    %v1585 = vld [vmem:[#allocation4 + $0x160] sm:$0xff]
    %v1586 = vld [vmem:[#allocation4 + $0x168] sm:$0xff]
    %v1587 = vld [vmem:[#allocation4 + $0x170] sm:$0xff]
    %v1588 = vld [vmem:[#allocation4 + $0x178] sm:$0xff]
    %v1589 = vld [vmem:[#allocation4 + $0x180] sm:$0xff]
    %v1590 = vld [vmem:[#allocation4 + $0x188] sm:$0xff]
    %v1591 = vld [vmem:[#allocation4 + $0x190] sm:$0xff]
    %v1592 = vld [vmem:[#allocation4 + $0x198] sm:$0xff]
    %v1593 = vld [vmem:[#allocation4 + $0x1a0] sm:$0xff]
    %v1594 = vld [vmem:[#allocation4 + $0x1a8] sm:$0xff]
    %v1595 = vld [vmem:[#allocation4 + $0x1b0] sm:$0xff]
    %v1596 = vld [vmem:[#allocation4 + $0x1b8] sm:$0xff]
    %v1597 = vld [vmem:[#allocation4 + $0x1c0] sm:$0xff]
    %v1598 = vld [vmem:[#allocation4 + $0x1c8] sm:$0xff]
    %v1599 = vld [vmem:[#allocation4 + $0x1d0] sm:$0xff]
    %v1600 = vld [vmem:[#allocation4 + $0x1d8] sm:$0xff]
    %v1601 = vld [vmem:[#allocation4 + $0x1e0] sm:$0xff]
    %v1602 = vld [vmem:[#allocation4 + $0x1e8] sm:$0xff]
    %v1603 = vld [vmem:[#allocation4 + $0x1f0] sm:$0xff]
    %v1604 = vld [vmem:[#allocation4 + $0x1f8] sm:$0xff]
    %1605 = vmatprep.subr.mxu0 %v1602
    %1606 = vmatpush1.msra.mxu0 %v1601
    %1607 = vmatprep.subr.mxu0 %v1598
    %1608 = vmatpush1.msra.mxu0 %v1597
    %1609 = vmatprep.subr.mxu0 %v1594
    %1610 = vmatpush1.msra.mxu0 %v1593
    %1611 = vmatprep.subr.mxu0 %v1590
    %1612 = vmatpush1.msra.mxu0 %v1589
    %1613 = vmatprep.subr.mxu0 %v1586
    %1614 = vmatpush1.msra.mxu0 %v1585
    %1615 = vmatprep.subr.mxu0 %v1582
    %1616 = vmatpush1.msra.mxu0 %v1581
    %1617 = vmatprep.subr.mxu0 %v1578
    %1618 = vmatpush1.msra.mxu0 %v1577
    %1619 = vmatprep.subr.mxu0 %v1574
    %1620 = vmatpush1.msra.mxu0 %v1573
    %1621 = vmatprep.subr.mxu0 %v1570
    %1622 = vmatpush1.msra.mxu0 %v1569
    %1623 = vmatprep.subr.mxu0 %v1566
    %1624 = vmatpush1.msra.mxu0 %v1565
    %1625 = vmatprep.subr.mxu0 %v1562
    %1626 = vmatpush1.msra.mxu0 %v1561
    %1627 = vmatprep.subr.mxu0 %v1558
    %1628 = vmatpush1.msra.mxu0 %v1557
    %1629 = vmatprep.subr.mxu0 %v1554
    %1630 = vmatpush1.msra.mxu0 %v1553
    %1631 = vmatprep.subr.mxu0 %v1550
    %1632 = vmatpush1.msra.mxu0 %v1549
    %1633 = vmatprep.subr.mxu0 %v1546
    %1634 = vmatpush1.msra.mxu0 %v1545
    %1635 = vmatprep.subr.mxu0 %v1542
    %1636 = vmatpush1.msra.mxu0 %v1541
    %1637 = vmatprep.subr.mxu0 0.0
    %1638 = vmatpush2.msra.mxu0 0.0
    %1639 = vmatprep.subr.mxu0 0.0
    %1640 = vmatpush2.msra.mxu0 0.0
    %1641 = vmatprep.subr.mxu0 0.0
    %1642 = vmatpush2.msra.mxu0 0.0
    %1643 = vmatprep.subr.mxu0 0.0
    %1644 = vmatpush2.msra.mxu0 0.0
    %1645 = vmatprep.subr.mxu0 0.0
    %1646 = vmatpush2.msra.mxu0 0.0
    %1647 = vmatprep.subr.mxu0 0.0
    %1648 = vmatpush2.msra.mxu0 0.0
    %1649 = vmatprep.subr.mxu0 0.0
    %1650 = vmatpush2.msra.mxu0 0.0
    %1651 = vmatprep.subr.mxu0 0.0
    %1652 = vmatpush2.msra.mxu0 0.0
    %1653 = vmatprep.subr.mxu0 0.0
    %1654 = vmatpush2.msra.mxu0 0.0
    %1655 = vmatprep.subr.mxu0 0.0
    %1656 = vmatpush2.msra.mxu0 0.0
    %1657 = vmatprep.subr.mxu0 0.0
    %1658 = vmatpush2.msra.mxu0 0.0
    %1659 = vmatprep.subr.mxu0 0.0
    %1660 = vmatpush2.msra.mxu0 0.0
    %1661 = vmatprep.subr.mxu0 0.0
    %1662 = vmatpush2.msra.mxu0 0.0
    %1663 = vmatprep.subr.mxu0 0.0
    %1664 = vmatpush2.msra.mxu0 0.0
    %1665 = vmatprep.subr.mxu0 0.0
    %1666 = vmatpush2.msra.mxu0 0.0
    %1667 = vmatprep.subr.mxu0 0.0
    %1668 = vmatpush2.msra.mxu0 0.0
    %1669 = vmatprep.mubr.f32.mxu0 0.0
    %1670 = vmatmul.mubr.f32.gmra.mxu0 %v1535
    %v1671 = vpop.f32.mrf.mxu0
    %v1672 = vadd.f32 0.0, %v1671
    %v1673 = vpop.f32.mrf.mxu0
    %v1674 = vadd.f32 0.0, %v1673
    %1675 = vdwg.mxu0
    %1676 = vmatprep.subr.mxu0 %v1604
    %1677 = vmatpush1.msra.mxu0 %v1603
    %1678 = vmatprep.subr.mxu0 %v1600
    %1679 = vmatpush1.msra.mxu0 %v1599
    %1680 = vmatprep.subr.mxu0 %v1596
    %1681 = vmatpush1.msra.mxu0 %v1595
    %1682 = vmatprep.subr.mxu0 %v1592
    %1683 = vmatpush1.msra.mxu0 %v1591
    %1684 = vmatprep.subr.mxu0 %v1588
    %1685 = vmatpush1.msra.mxu0 %v1587
    %1686 = vmatprep.subr.mxu0 %v1584
    %1687 = vmatpush1.msra.mxu0 %v1583
    %1688 = vmatprep.subr.mxu0 %v1580
    %1689 = vmatpush1.msra.mxu0 %v1579
    %1690 = vmatprep.subr.mxu0 %v1576
    %1691 = vmatpush1.msra.mxu0 %v1575
    %1692 = vmatprep.subr.mxu0 %v1572
    %1693 = vmatpush1.msra.mxu0 %v1571
    %1694 = vmatprep.subr.mxu0 %v1568
    %1695 = vmatpush1.msra.mxu0 %v1567
    %1696 = vmatprep.subr.mxu0 %v1564
    %1697 = vmatpush1.msra.mxu0 %v1563
    %1698 = vmatprep.subr.mxu0 %v1560
    %1699 = vmatpush1.msra.mxu0 %v1559
    %1700 = vmatprep.subr.mxu0 %v1556
    %1701 = vmatpush1.msra.mxu0 %v1555
    %1702 = vmatprep.subr.mxu0 %v1552
    %1703 = vmatpush1.msra.mxu0 %v1551
    %1704 = vmatprep.subr.mxu0 %v1548
    %1705 = vmatpush1.msra.mxu0 %v1547
    %1706 = vmatprep.subr.mxu0 %v1544
    %1707 = vmatpush1.msra.mxu0 %v1543
    %1708 = vmatprep.subr.mxu0 0.0
    %1709 = vmatpush2.msra.mxu0 0.0
    %1710 = vmatprep.subr.mxu0 0.0
    %1711 = vmatpush2.msra.mxu0 0.0
    %1712 = vmatprep.subr.mxu0 0.0
    %1713 = vmatpush2.msra.mxu0 0.0
    %1714 = vmatprep.subr.mxu0 0.0
    %1715 = vmatpush2.msra.mxu0 0.0
    %1716 = vmatprep.subr.mxu0 0.0
    %1717 = vmatpush2.msra.mxu0 0.0
    %1718 = vmatprep.subr.mxu0 0.0
    %1719 = vmatpush2.msra.mxu0 0.0
    %1720 = vmatprep.subr.mxu0 0.0
    %1721 = vmatpush2.msra.mxu0 0.0
    %1722 = vmatprep.subr.mxu0 0.0
    %1723 = vmatpush2.msra.mxu0 0.0
    %1724 = vmatprep.subr.mxu0 0.0
    %1725 = vmatpush2.msra.mxu0 0.0
    %1726 = vmatprep.subr.mxu0 0.0
    %1727 = vmatpush2.msra.mxu0 0.0
    %1728 = vmatprep.subr.mxu0 0.0
    %1729 = vmatpush2.msra.mxu0 0.0
    %1730 = vmatprep.subr.mxu0 0.0
    %1731 = vmatpush2.msra.mxu0 0.0
    %1732 = vmatprep.subr.mxu0 0.0
    %1733 = vmatpush2.msra.mxu0 0.0
    %1734 = vmatprep.subr.mxu0 0.0
    %1735 = vmatpush2.msra.mxu0 0.0
    %1736 = vmatprep.subr.mxu0 0.0
    %1737 = vmatpush2.msra.mxu0 0.0
    %1738 = vmatprep.subr.mxu0 0.0
    %1739 = vmatpush2.msra.mxu0 0.0
    %1740 = vmatprep.mubr.f32.mxu0 0.0
    %1741 = vmatmul.mubr.f32.gmra.mxu0 %v1535
    %v1742 = vpop.f32.mrf.mxu0
    %v1743 = vadd.f32 0.0, %v1742
    %v1744 = vpop.f32.mrf.mxu0
    %v1745 = vadd.f32 0.0, %v1744
    %1746 = vdwg.mxu0
    %v1747 = vadd.f32 %v1537, %v1672
    %v1748 = vadd.f32 %v1538, %v1674
    %v1749 = vadd.f32 %v1539, %v1743
    %v1750 = vadd.f32 %v1540, %v1745
    %v1751 = vxor.u32 %v1747, 2147483648
    %v1752 = vxor.u32 %v1748, 2147483648
    %v1753 = vxor.u32 %v1749, 2147483648
    %v1754 = vmul.f32 %v1751, 1.442695
    %v1755 = vpow.pop %v1754
    %v1756 = vmul.f32 %v1752, 1.442695
    %v1757 = vpow.pop %v1756
    %v1758 = vmul.f32 %v1753, 1.442695
    %v1759 = vpow.pop %v1758
    %v1760 = vadd.f32 %v1755, 1.0
    %v1761 = vadd.f32 %v1757, 1.0
    %v1762 = vadd.f32 %v1759, 1.0
    %v1763 = vrcp.pop %v1760
    %v1764 = vmul.f32 1.0, %v1763
    %v1765 = vrcp.pop %v1761
    %v1766 = vmul.f32 1.0, %v1765
    %v1767 = vrcp.pop %v1762
    %v1768 = vmul.f32 1.0, %v1767
    %v1769 = vtanh.pop %v1750
    %v1770 = vmul.f32 %v1766, %v1533
    %v1771 = vmul.f32 %v1764, %v1769
    %v1772 = vadd.f32 %v1770, %v1771
    %v1773 = vtanh.pop %v1772
    %v1774 = vmul.f32 %v1768, %v1773
    %1775 = vst [vmem:[#allocation3 + $0x28] sm:$0xff] %v1774
    %v1776 = vld [vmem:[#allocation2 + $0xc0] sm:$0xff]
    %v1777 = vld [vmem:[#allocation2 + $0xc8] sm:$0xff]
    %v1778 = vld [vmem:[#allocation2 + $0xd0] sm:$0xff]
    %v1779 = vld [vmem:[#allocation2 + $0xd8] sm:$0xff]
    %v1780 = vld [vmem:[#allocation4] sm:$0xff]
    %v1781 = vld [vmem:[#allocation4 + $0x8] sm:$0xff]
    %v1782 = vld [vmem:[#allocation4 + $0x10] sm:$0xff]
    %v1783 = vld [vmem:[#allocation4 + $0x18] sm:$0xff]
    %v1784 = vld [vmem:[#allocation4 + $0x20] sm:$0xff]
    %v1785 = vld [vmem:[#allocation4 + $0x28] sm:$0xff]
    %v1786 = vld [vmem:[#allocation4 + $0x30] sm:$0xff]
    %v1787 = vld [vmem:[#allocation4 + $0x38] sm:$0xff]
    %v1788 = vld [vmem:[#allocation4 + $0x40] sm:$0xff]
    %v1789 = vld [vmem:[#allocation4 + $0x48] sm:$0xff]
    %v1790 = vld [vmem:[#allocation4 + $0x50] sm:$0xff]
    %v1791 = vld [vmem:[#allocation4 + $0x58] sm:$0xff]
    %v1792 = vld [vmem:[#allocation4 + $0x60] sm:$0xff]
    %v1793 = vld [vmem:[#allocation4 + $0x68] sm:$0xff]
    %v1794 = vld [vmem:[#allocation4 + $0x70] sm:$0xff]
    %v1795 = vld [vmem:[#allocation4 + $0x78] sm:$0xff]
    %v1796 = vld [vmem:[#allocation4 + $0x80] sm:$0xff]
    %v1797 = vld [vmem:[#allocation4 + $0x88] sm:$0xff]
    %v1798 = vld [vmem:[#allocation4 + $0x90] sm:$0xff]
    %v1799 = vld [vmem:[#allocation4 + $0x98] sm:$0xff]
    %v1800 = vld [vmem:[#allocation4 + $0xa0] sm:$0xff]
    %v1801 = vld [vmem:[#allocation4 + $0xa8] sm:$0xff]
    %v1802 = vld [vmem:[#allocation4 + $0xb0] sm:$0xff]
    %v1803 = vld [vmem:[#allocation4 + $0xb8] sm:$0xff]
    %v1804 = vld [vmem:[#allocation4 + $0xc0] sm:$0xff]
    %v1805 = vld [vmem:[#allocation4 + $0xc8] sm:$0xff]
    %v1806 = vld [vmem:[#allocation4 + $0xd0] sm:$0xff]
    %v1807 = vld [vmem:[#allocation4 + $0xd8] sm:$0xff]
    %v1808 = vld [vmem:[#allocation4 + $0xe0] sm:$0xff]
    %v1809 = vld [vmem:[#allocation4 + $0xe8] sm:$0xff]
    %v1810 = vld [vmem:[#allocation4 + $0xf0] sm:$0xff]
    %v1811 = vld [vmem:[#allocation4 + $0xf8] sm:$0xff]
    %v1812 = vld [vmem:[#allocation4 + $0x100] sm:$0xff]
    %v1813 = vld [vmem:[#allocation4 + $0x108] sm:$0xff]
    %v1814 = vld [vmem:[#allocation4 + $0x110] sm:$0xff]
    %v1815 = vld [vmem:[#allocation4 + $0x118] sm:$0xff]
    %v1816 = vld [vmem:[#allocation4 + $0x120] sm:$0xff]
    %v1817 = vld [vmem:[#allocation4 + $0x128] sm:$0xff]
    %v1818 = vld [vmem:[#allocation4 + $0x130] sm:$0xff]
    %v1819 = vld [vmem:[#allocation4 + $0x138] sm:$0xff]
    %v1820 = vld [vmem:[#allocation4 + $0x140] sm:$0xff]
    %v1821 = vld [vmem:[#allocation4 + $0x148] sm:$0xff]
    %v1822 = vld [vmem:[#allocation4 + $0x150] sm:$0xff]
    %v1823 = vld [vmem:[#allocation4 + $0x158] sm:$0xff]
    %v1824 = vld [vmem:[#allocation4 + $0x160] sm:$0xff]
    %v1825 = vld [vmem:[#allocation4 + $0x168] sm:$0xff]
    %v1826 = vld [vmem:[#allocation4 + $0x170] sm:$0xff]
    %v1827 = vld [vmem:[#allocation4 + $0x178] sm:$0xff]
    %v1828 = vld [vmem:[#allocation4 + $0x180] sm:$0xff]
    %v1829 = vld [vmem:[#allocation4 + $0x188] sm:$0xff]
    %v1830 = vld [vmem:[#allocation4 + $0x190] sm:$0xff]
    %v1831 = vld [vmem:[#allocation4 + $0x198] sm:$0xff]
    %v1832 = vld [vmem:[#allocation4 + $0x1a0] sm:$0xff]
    %v1833 = vld [vmem:[#allocation4 + $0x1a8] sm:$0xff]
    %v1834 = vld [vmem:[#allocation4 + $0x1b0] sm:$0xff]
    %v1835 = vld [vmem:[#allocation4 + $0x1b8] sm:$0xff]
    %v1836 = vld [vmem:[#allocation4 + $0x1c0] sm:$0xff]
    %v1837 = vld [vmem:[#allocation4 + $0x1c8] sm:$0xff]
    %v1838 = vld [vmem:[#allocation4 + $0x1d0] sm:$0xff]
    %v1839 = vld [vmem:[#allocation4 + $0x1d8] sm:$0xff]
    %v1840 = vld [vmem:[#allocation4 + $0x1e0] sm:$0xff]
    %v1841 = vld [vmem:[#allocation4 + $0x1e8] sm:$0xff]
    %v1842 = vld [vmem:[#allocation4 + $0x1f0] sm:$0xff]
    %v1843 = vld [vmem:[#allocation4 + $0x1f8] sm:$0xff]
    %1844 = vmatprep.subr.mxu0 %v1841
    %1845 = vmatpush1.msra.mxu0 %v1840
    %1846 = vmatprep.subr.mxu0 %v1837
    %1847 = vmatpush1.msra.mxu0 %v1836
    %1848 = vmatprep.subr.mxu0 %v1833
    %1849 = vmatpush1.msra.mxu0 %v1832
    %1850 = vmatprep.subr.mxu0 %v1829
    %1851 = vmatpush1.msra.mxu0 %v1828
    %1852 = vmatprep.subr.mxu0 %v1825
    %1853 = vmatpush1.msra.mxu0 %v1824
    %1854 = vmatprep.subr.mxu0 %v1821
    %1855 = vmatpush1.msra.mxu0 %v1820
    %1856 = vmatprep.subr.mxu0 %v1817
    %1857 = vmatpush1.msra.mxu0 %v1816
    %1858 = vmatprep.subr.mxu0 %v1813
    %1859 = vmatpush1.msra.mxu0 %v1812
    %1860 = vmatprep.subr.mxu0 %v1809
    %1861 = vmatpush1.msra.mxu0 %v1808
    %1862 = vmatprep.subr.mxu0 %v1805
    %1863 = vmatpush1.msra.mxu0 %v1804
    %1864 = vmatprep.subr.mxu0 %v1801
    %1865 = vmatpush1.msra.mxu0 %v1800
    %1866 = vmatprep.subr.mxu0 %v1797
    %1867 = vmatpush1.msra.mxu0 %v1796
    %1868 = vmatprep.subr.mxu0 %v1793
    %1869 = vmatpush1.msra.mxu0 %v1792
    %1870 = vmatprep.subr.mxu0 %v1789
    %1871 = vmatpush1.msra.mxu0 %v1788
    %1872 = vmatprep.subr.mxu0 %v1785
    %1873 = vmatpush1.msra.mxu0 %v1784
    %1874 = vmatprep.subr.mxu0 %v1781
    %1875 = vmatpush1.msra.mxu0 %v1780
    %1876 = vmatprep.subr.mxu0 0.0
    %1877 = vmatpush2.msra.mxu0 0.0
    %1878 = vmatprep.subr.mxu0 0.0
    %1879 = vmatpush2.msra.mxu0 0.0
    %1880 = vmatprep.subr.mxu0 0.0
    %1881 = vmatpush2.msra.mxu0 0.0
    %1882 = vmatprep.subr.mxu0 0.0
    %1883 = vmatpush2.msra.mxu0 0.0
    %1884 = vmatprep.subr.mxu0 0.0
    %1885 = vmatpush2.msra.mxu0 0.0
    %1886 = vmatprep.subr.mxu0 0.0
    %1887 = vmatpush2.msra.mxu0 0.0
    %1888 = vmatprep.subr.mxu0 0.0
    %1889 = vmatpush2.msra.mxu0 0.0
    %1890 = vmatprep.subr.mxu0 0.0
    %1891 = vmatpush2.msra.mxu0 0.0
    %1892 = vmatprep.subr.mxu0 0.0
    %1893 = vmatpush2.msra.mxu0 0.0
    %1894 = vmatprep.subr.mxu0 0.0
    %1895 = vmatpush2.msra.mxu0 0.0
    %1896 = vmatprep.subr.mxu0 0.0
    %1897 = vmatpush2.msra.mxu0 0.0
    %1898 = vmatprep.subr.mxu0 0.0
    %1899 = vmatpush2.msra.mxu0 0.0
    %1900 = vmatprep.subr.mxu0 0.0
    %1901 = vmatpush2.msra.mxu0 0.0
    %1902 = vmatprep.subr.mxu0 0.0
    %1903 = vmatpush2.msra.mxu0 0.0
    %1904 = vmatprep.subr.mxu0 0.0
    %1905 = vmatpush2.msra.mxu0 0.0
    %1906 = vmatprep.subr.mxu0 0.0
    %1907 = vmatpush2.msra.mxu0 0.0
    %1908 = vmatprep.mubr.f32.mxu0 0.0
    %1909 = vmatmul.mubr.f32.gmra.mxu0 %v1774
    %v1910 = vpop.f32.mrf.mxu0
    %v1911 = vadd.f32 0.0, %v1910
    %v1912 = vpop.f32.mrf.mxu0
    %v1913 = vadd.f32 0.0, %v1912
    %1914 = vdwg.mxu0
    %1915 = vmatprep.subr.mxu0 %v1843
    %1916 = vmatpush1.msra.mxu0 %v1842
    %1917 = vmatprep.subr.mxu0 %v1839
    %1918 = vmatpush1.msra.mxu0 %v1838
    %1919 = vmatprep.subr.mxu0 %v1835
    %1920 = vmatpush1.msra.mxu0 %v1834
    %1921 = vmatprep.subr.mxu0 %v1831
    %1922 = vmatpush1.msra.mxu0 %v1830
    %1923 = vmatprep.subr.mxu0 %v1827
    %1924 = vmatpush1.msra.mxu0 %v1826
    %1925 = vmatprep.subr.mxu0 %v1823
    %1926 = vmatpush1.msra.mxu0 %v1822
    %1927 = vmatprep.subr.mxu0 %v1819
    %1928 = vmatpush1.msra.mxu0 %v1818
    %1929 = vmatprep.subr.mxu0 %v1815
    %1930 = vmatpush1.msra.mxu0 %v1814
    %1931 = vmatprep.subr.mxu0 %v1811
    %1932 = vmatpush1.msra.mxu0 %v1810
    %1933 = vmatprep.subr.mxu0 %v1807
    %1934 = vmatpush1.msra.mxu0 %v1806
    %1935 = vmatprep.subr.mxu0 %v1803
    %1936 = vmatpush1.msra.mxu0 %v1802
    %1937 = vmatprep.subr.mxu0 %v1799
    %1938 = vmatpush1.msra.mxu0 %v1798
    %1939 = vmatprep.subr.mxu0 %v1795
    %1940 = vmatpush1.msra.mxu0 %v1794
    %1941 = vmatprep.subr.mxu0 %v1791
    %1942 = vmatpush1.msra.mxu0 %v1790
    %1943 = vmatprep.subr.mxu0 %v1787
    %1944 = vmatpush1.msra.mxu0 %v1786
    %1945 = vmatprep.subr.mxu0 %v1783
    %1946 = vmatpush1.msra.mxu0 %v1782
    %1947 = vmatprep.subr.mxu0 0.0
    %1948 = vmatpush2.msra.mxu0 0.0
    %1949 = vmatprep.subr.mxu0 0.0
    %1950 = vmatpush2.msra.mxu0 0.0
    %1951 = vmatprep.subr.mxu0 0.0
    %1952 = vmatpush2.msra.mxu0 0.0
    %1953 = vmatprep.subr.mxu0 0.0
    %1954 = vmatpush2.msra.mxu0 0.0
    %1955 = vmatprep.subr.mxu0 0.0
    %1956 = vmatpush2.msra.mxu0 0.0
    %1957 = vmatprep.subr.mxu0 0.0
    %1958 = vmatpush2.msra.mxu0 0.0
    %1959 = vmatprep.subr.mxu0 0.0
    %1960 = vmatpush2.msra.mxu0 0.0
    %1961 = vmatprep.subr.mxu0 0.0
    %1962 = vmatpush2.msra.mxu0 0.0
    %1963 = vmatprep.subr.mxu0 0.0
    %1964 = vmatpush2.msra.mxu0 0.0
    %1965 = vmatprep.subr.mxu0 0.0
    %1966 = vmatpush2.msra.mxu0 0.0
    %1967 = vmatprep.subr.mxu0 0.0
    %1968 = vmatpush2.msra.mxu0 0.0
    %1969 = vmatprep.subr.mxu0 0.0
    %1970 = vmatpush2.msra.mxu0 0.0
    %1971 = vmatprep.subr.mxu0 0.0
    %1972 = vmatpush2.msra.mxu0 0.0
    %1973 = vmatprep.subr.mxu0 0.0
    %1974 = vmatpush2.msra.mxu0 0.0
    %1975 = vmatprep.subr.mxu0 0.0
    %1976 = vmatpush2.msra.mxu0 0.0
    %1977 = vmatprep.subr.mxu0 0.0
    %1978 = vmatpush2.msra.mxu0 0.0
    %1979 = vmatprep.mubr.f32.mxu0 0.0
    %1980 = vmatmul.mubr.f32.gmra.mxu0 %v1774
    %v1981 = vpop.f32.mrf.mxu0
    %v1982 = vadd.f32 0.0, %v1981
    %v1983 = vpop.f32.mrf.mxu0
    %v1984 = vadd.f32 0.0, %v1983
    %1985 = vdwg.mxu0
    %v1986 = vadd.f32 %v1776, %v1911
    %v1987 = vadd.f32 %v1777, %v1913
    %v1988 = vadd.f32 %v1778, %v1982
    %v1989 = vadd.f32 %v1779, %v1984
    %v1990 = vxor.u32 %v1986, 2147483648
    %v1991 = vxor.u32 %v1987, 2147483648
    %v1992 = vxor.u32 %v1988, 2147483648
    %v1993 = vmul.f32 %v1990, 1.442695
    %v1994 = vpow.pop %v1993
    %v1995 = vmul.f32 %v1991, 1.442695
    %v1996 = vpow.pop %v1995
    %v1997 = vmul.f32 %v1992, 1.442695
    %v1998 = vpow.pop %v1997
    %v1999 = vadd.f32 %v1994, 1.0
    %v2000 = vadd.f32 %v1996, 1.0
    %v2001 = vadd.f32 %v1998, 1.0
    %v2002 = vrcp.pop %v1999
    %v2003 = vmul.f32 1.0, %v2002
    %v2004 = vrcp.pop %v2000
    %v2005 = vmul.f32 1.0, %v2004
    %v2006 = vrcp.pop %v2001
    %v2007 = vmul.f32 1.0, %v2006
    %v2008 = vtanh.pop %v1989
    %v2009 = vmul.f32 %v2005, %v1772
    %v2010 = vmul.f32 %v2003, %v2008
    %v2011 = vadd.f32 %v2009, %v2010
    %v2012 = vtanh.pop %v2011
    %v2013 = vmul.f32 %v2007, %v2012
    %2014 = vst [vmem:[#allocation3 + $0x30] sm:$0xff] %v2013
    %v2015 = vld [vmem:[#allocation2 + $0xe0] sm:$0xff]
    %v2016 = vld [vmem:[#allocation2 + $0xe8] sm:$0xff]
    %v2017 = vld [vmem:[#allocation2 + $0xf0] sm:$0xff]
    %v2018 = vld [vmem:[#allocation2 + $0xf8] sm:$0xff]
    %v2019 = vld [vmem:[#allocation4] sm:$0xff]
    %v2020 = vld [vmem:[#allocation4 + $0x8] sm:$0xff]
    %v2021 = vld [vmem:[#allocation4 + $0x10] sm:$0xff]
    %v2022 = vld [vmem:[#allocation4 + $0x18] sm:$0xff]
    %v2023 = vld [vmem:[#allocation4 + $0x20] sm:$0xff]
    %v2024 = vld [vmem:[#allocation4 + $0x28] sm:$0xff]
    %v2025 = vld [vmem:[#allocation4 + $0x30] sm:$0xff]
    %v2026 = vld [vmem:[#allocation4 + $0x38] sm:$0xff]
    %v2027 = vld [vmem:[#allocation4 + $0x40] sm:$0xff]
    %v2028 = vld [vmem:[#allocation4 + $0x48] sm:$0xff]
    %v2029 = vld [vmem:[#allocation4 + $0x50] sm:$0xff]
    %v2030 = vld [vmem:[#allocation4 + $0x58] sm:$0xff]
    %v2031 = vld [vmem:[#allocation4 + $0x60] sm:$0xff]
    %v2032 = vld [vmem:[#allocation4 + $0x68] sm:$0xff]
    %v2033 = vld [vmem:[#allocation4 + $0x70] sm:$0xff]
    %v2034 = vld [vmem:[#allocation4 + $0x78] sm:$0xff]
    %v2035 = vld [vmem:[#allocation4 + $0x80] sm:$0xff]
    %v2036 = vld [vmem:[#allocation4 + $0x88] sm:$0xff]
    %v2037 = vld [vmem:[#allocation4 + $0x90] sm:$0xff]
    %v2038 = vld [vmem:[#allocation4 + $0x98] sm:$0xff]
    %v2039 = vld [vmem:[#allocation4 + $0xa0] sm:$0xff]
    %v2040 = vld [vmem:[#allocation4 + $0xa8] sm:$0xff]
    %v2041 = vld [vmem:[#allocation4 + $0xb0] sm:$0xff]
    %v2042 = vld [vmem:[#allocation4 + $0xb8] sm:$0xff]
    %v2043 = vld [vmem:[#allocation4 + $0xc0] sm:$0xff]
    %v2044 = vld [vmem:[#allocation4 + $0xc8] sm:$0xff]
    %v2045 = vld [vmem:[#allocation4 + $0xd0] sm:$0xff]
    %v2046 = vld [vmem:[#allocation4 + $0xd8] sm:$0xff]
    %v2047 = vld [vmem:[#allocation4 + $0xe0] sm:$0xff]
    %v2048 = vld [vmem:[#allocation4 + $0xe8] sm:$0xff]
    %v2049 = vld [vmem:[#allocation4 + $0xf0] sm:$0xff]
    %v2050 = vld [vmem:[#allocation4 + $0xf8] sm:$0xff]
    %v2051 = vld [vmem:[#allocation4 + $0x100] sm:$0xff]
    %v2052 = vld [vmem:[#allocation4 + $0x108] sm:$0xff]
    %v2053 = vld [vmem:[#allocation4 + $0x110] sm:$0xff]
    %v2054 = vld [vmem:[#allocation4 + $0x118] sm:$0xff]
    %v2055 = vld [vmem:[#allocation4 + $0x120] sm:$0xff]
    %v2056 = vld [vmem:[#allocation4 + $0x128] sm:$0xff]
    %v2057 = vld [vmem:[#allocation4 + $0x130] sm:$0xff]
    %v2058 = vld [vmem:[#allocation4 + $0x138] sm:$0xff]
    %v2059 = vld [vmem:[#allocation4 + $0x140] sm:$0xff]
    %v2060 = vld [vmem:[#allocation4 + $0x148] sm:$0xff]
    %v2061 = vld [vmem:[#allocation4 + $0x150] sm:$0xff]
    %v2062 = vld [vmem:[#allocation4 + $0x158] sm:$0xff]
    %v2063 = vld [vmem:[#allocation4 + $0x160] sm:$0xff]
    %v2064 = vld [vmem:[#allocation4 + $0x168] sm:$0xff]
    %v2065 = vld [vmem:[#allocation4 + $0x170] sm:$0xff]
    %v2066 = vld [vmem:[#allocation4 + $0x178] sm:$0xff]
    %v2067 = vld [vmem:[#allocation4 + $0x180] sm:$0xff]
    %v2068 = vld [vmem:[#allocation4 + $0x188] sm:$0xff]
    %v2069 = vld [vmem:[#allocation4 + $0x190] sm:$0xff]
    %v2070 = vld [vmem:[#allocation4 + $0x198] sm:$0xff]
    %v2071 = vld [vmem:[#allocation4 + $0x1a0] sm:$0xff]
    %v2072 = vld [vmem:[#allocation4 + $0x1a8] sm:$0xff]
    %v2073 = vld [vmem:[#allocation4 + $0x1b0] sm:$0xff]
    %v2074 = vld [vmem:[#allocation4 + $0x1b8] sm:$0xff]
    %v2075 = vld [vmem:[#allocation4 + $0x1c0] sm:$0xff]
    %v2076 = vld [vmem:[#allocation4 + $0x1c8] sm:$0xff]
    %v2077 = vld [vmem:[#allocation4 + $0x1d0] sm:$0xff]
    %v2078 = vld [vmem:[#allocation4 + $0x1d8] sm:$0xff]
    %v2079 = vld [vmem:[#allocation4 + $0x1e0] sm:$0xff]
    %v2080 = vld [vmem:[#allocation4 + $0x1e8] sm:$0xff]
    %v2081 = vld [vmem:[#allocation4 + $0x1f0] sm:$0xff]
    %v2082 = vld [vmem:[#allocation4 + $0x1f8] sm:$0xff]
    %2083 = vmatprep.subr.mxu0 %v2080
    %2084 = vmatpush1.msra.mxu0 %v2079
    %2085 = vmatprep.subr.mxu0 %v2076
    %2086 = vmatpush1.msra.mxu0 %v2075
    %2087 = vmatprep.subr.mxu0 %v2072
    %2088 = vmatpush1.msra.mxu0 %v2071
    %2089 = vmatprep.subr.mxu0 %v2068
    %2090 = vmatpush1.msra.mxu0 %v2067
    %2091 = vmatprep.subr.mxu0 %v2064
    %2092 = vmatpush1.msra.mxu0 %v2063
    %2093 = vmatprep.subr.mxu0 %v2060
    %2094 = vmatpush1.msra.mxu0 %v2059
    %2095 = vmatprep.subr.mxu0 %v2056
    %2096 = vmatpush1.msra.mxu0 %v2055
    %2097 = vmatprep.subr.mxu0 %v2052
    %2098 = vmatpush1.msra.mxu0 %v2051
    %2099 = vmatprep.subr.mxu0 %v2048
    %2100 = vmatpush1.msra.mxu0 %v2047
    %2101 = vmatprep.subr.mxu0 %v2044
    %2102 = vmatpush1.msra.mxu0 %v2043
    %2103 = vmatprep.subr.mxu0 %v2040
    %2104 = vmatpush1.msra.mxu0 %v2039
    %2105 = vmatprep.subr.mxu0 %v2036
    %2106 = vmatpush1.msra.mxu0 %v2035
    %2107 = vmatprep.subr.mxu0 %v2032
    %2108 = vmatpush1.msra.mxu0 %v2031
    %2109 = vmatprep.subr.mxu0 %v2028
    %2110 = vmatpush1.msra.mxu0 %v2027
    %2111 = vmatprep.subr.mxu0 %v2024
    %2112 = vmatpush1.msra.mxu0 %v2023
    %2113 = vmatprep.subr.mxu0 %v2020
    %2114 = vmatpush1.msra.mxu0 %v2019
    %2115 = vmatprep.subr.mxu0 0.0
    %2116 = vmatpush2.msra.mxu0 0.0
    %2117 = vmatprep.subr.mxu0 0.0
    %2118 = vmatpush2.msra.mxu0 0.0
    %2119 = vmatprep.subr.mxu0 0.0
    %2120 = vmatpush2.msra.mxu0 0.0
    %2121 = vmatprep.subr.mxu0 0.0
    %2122 = vmatpush2.msra.mxu0 0.0
    %2123 = vmatprep.subr.mxu0 0.0
    %2124 = vmatpush2.msra.mxu0 0.0
    %2125 = vmatprep.subr.mxu0 0.0
    %2126 = vmatpush2.msra.mxu0 0.0
    %2127 = vmatprep.subr.mxu0 0.0
    %2128 = vmatpush2.msra.mxu0 0.0
    %2129 = vmatprep.subr.mxu0 0.0
    %2130 = vmatpush2.msra.mxu0 0.0
    %2131 = vmatprep.subr.mxu0 0.0
    %2132 = vmatpush2.msra.mxu0 0.0
    %2133 = vmatprep.subr.mxu0 0.0
    %2134 = vmatpush2.msra.mxu0 0.0
    %2135 = vmatprep.subr.mxu0 0.0
    %2136 = vmatpush2.msra.mxu0 0.0
    %2137 = vmatprep.subr.mxu0 0.0
    %2138 = vmatpush2.msra.mxu0 0.0
    %2139 = vmatprep.subr.mxu0 0.0
    %2140 = vmatpush2.msra.mxu0 0.0
    %2141 = vmatprep.subr.mxu0 0.0
    %2142 = vmatpush2.msra.mxu0 0.0
    %2143 = vmatprep.subr.mxu0 0.0
    %2144 = vmatpush2.msra.mxu0 0.0
    %2145 = vmatprep.subr.mxu0 0.0
    %2146 = vmatpush2.msra.mxu0 0.0
    %2147 = vmatprep.mubr.f32.mxu0 0.0
    %2148 = vmatmul.mubr.f32.gmra.mxu0 %v2013
    %v2149 = vpop.f32.mrf.mxu0
    %v2150 = vadd.f32 0.0, %v2149
    %v2151 = vpop.f32.mrf.mxu0
    %v2152 = vadd.f32 0.0, %v2151
    %2153 = vdwg.mxu0
    %2154 = vmatprep.subr.mxu0 %v2082
    %2155 = vmatpush1.msra.mxu0 %v2081
    %2156 = vmatprep.subr.mxu0 %v2078
    %2157 = vmatpush1.msra.mxu0 %v2077
    %2158 = vmatprep.subr.mxu0 %v2074
    %2159 = vmatpush1.msra.mxu0 %v2073
    %2160 = vmatprep.subr.mxu0 %v2070
    %2161 = vmatpush1.msra.mxu0 %v2069
    %2162 = vmatprep.subr.mxu0 %v2066
    %2163 = vmatpush1.msra.mxu0 %v2065
    %2164 = vmatprep.subr.mxu0 %v2062
    %2165 = vmatpush1.msra.mxu0 %v2061
    %2166 = vmatprep.subr.mxu0 %v2058
    %2167 = vmatpush1.msra.mxu0 %v2057
    %2168 = vmatprep.subr.mxu0 %v2054
    %2169 = vmatpush1.msra.mxu0 %v2053
    %2170 = vmatprep.subr.mxu0 %v2050
    %2171 = vmatpush1.msra.mxu0 %v2049
    %2172 = vmatprep.subr.mxu0 %v2046
    %2173 = vmatpush1.msra.mxu0 %v2045
    %2174 = vmatprep.subr.mxu0 %v2042
    %2175 = vmatpush1.msra.mxu0 %v2041
    %2176 = vmatprep.subr.mxu0 %v2038
    %2177 = vmatpush1.msra.mxu0 %v2037
    %2178 = vmatprep.subr.mxu0 %v2034
    %2179 = vmatpush1.msra.mxu0 %v2033
    %2180 = vmatprep.subr.mxu0 %v2030
    %2181 = vmatpush1.msra.mxu0 %v2029
    %2182 = vmatprep.subr.mxu0 %v2026
    %2183 = vmatpush1.msra.mxu0 %v2025
    %2184 = vmatprep.subr.mxu0 %v2022
    %2185 = vmatpush1.msra.mxu0 %v2021
    %2186 = vmatprep.subr.mxu0 0.0
    %2187 = vmatpush2.msra.mxu0 0.0
    %2188 = vmatprep.subr.mxu0 0.0
    %2189 = vmatpush2.msra.mxu0 0.0
    %2190 = vmatprep.subr.mxu0 0.0
    %2191 = vmatpush2.msra.mxu0 0.0
    %2192 = vmatprep.subr.mxu0 0.0
    %2193 = vmatpush2.msra.mxu0 0.0
    %2194 = vmatprep.subr.mxu0 0.0
    %2195 = vmatpush2.msra.mxu0 0.0
    %2196 = vmatprep.subr.mxu0 0.0
    %2197 = vmatpush2.msra.mxu0 0.0
    %2198 = vmatprep.subr.mxu0 0.0
    %2199 = vmatpush2.msra.mxu0 0.0
    %2200 = vmatprep.subr.mxu0 0.0
    %2201 = vmatpush2.msra.mxu0 0.0
    %2202 = vmatprep.subr.mxu0 0.0
    %2203 = vmatpush2.msra.mxu0 0.0
    %2204 = vmatprep.subr.mxu0 0.0
    %2205 = vmatpush2.msra.mxu0 0.0
    %2206 = vmatprep.subr.mxu0 0.0
    %2207 = vmatpush2.msra.mxu0 0.0
    %2208 = vmatprep.subr.mxu0 0.0
    %2209 = vmatpush2.msra.mxu0 0.0
    %2210 = vmatprep.subr.mxu0 0.0
    %2211 = vmatpush2.msra.mxu0 0.0
    %2212 = vmatprep.subr.mxu0 0.0
    %2213 = vmatpush2.msra.mxu0 0.0
    %2214 = vmatprep.subr.mxu0 0.0
    %2215 = vmatpush2.msra.mxu0 0.0
    %2216 = vmatprep.subr.mxu0 0.0
    %2217 = vmatpush2.msra.mxu0 0.0
    %2218 = vmatprep.mubr.f32.mxu0 0.0
    %2219 = vmatmul.mubr.f32.gmra.mxu0 %v2013
    %v2220 = vpop.f32.mrf.mxu0
    %v2221 = vadd.f32 0.0, %v2220
    %v2222 = vpop.f32.mrf.mxu0
    %v2223 = vadd.f32 0.0, %v2222
    %2224 = vdwg.mxu0
    %v2225 = vadd.f32 %v2015, %v2150
    %v2226 = vadd.f32 %v2016, %v2152
    %v2227 = vadd.f32 %v2017, %v2221
    %v2228 = vadd.f32 %v2018, %v2223
    %v2229 = vxor.u32 %v2225, 2147483648
    %v2230 = vxor.u32 %v2226, 2147483648
    %v2231 = vxor.u32 %v2227, 2147483648
    %v2232 = vmul.f32 %v2229, 1.442695
    %v2233 = vpow.pop %v2232
    %v2234 = vmul.f32 %v2230, 1.442695
    %v2235 = vpow.pop %v2234
    %v2236 = vmul.f32 %v2231, 1.442695
    %v2237 = vpow.pop %v2236
    %v2238 = vadd.f32 %v2233, 1.0
    %v2239 = vadd.f32 %v2235, 1.0
    %v2240 = vadd.f32 %v2237, 1.0
    %v2241 = vrcp.pop %v2238
    %v2242 = vmul.f32 1.0, %v2241
    %v2243 = vrcp.pop %v2239
    %v2244 = vmul.f32 1.0, %v2243
    %v2245 = vrcp.pop %v2240
    %v2246 = vmul.f32 1.0, %v2245
    %v2247 = vtanh.pop %v2228
    %v2248 = vmul.f32 %v2244, %v2011
    %v2249 = vmul.f32 %v2242, %v2247
    %v2250 = vadd.f32 %v2248, %v2249
    %v2251 = vtanh.pop %v2250
    %v2252 = vmul.f32 %v2246, %v2251
    %2253 = vst [vmem:[#allocation3 + $0x38] sm:$0xff] %v2252
    %v2254 = vld [vmem:[#allocation3] sm:$0xff]
    %v2255 = vld [vmem:[#allocation3 + $0x8] sm:$0xff]
    %v2256 = vld [vmem:[#allocation3 + $0x10] sm:$0xff]
    %v2257 = vld [vmem:[#allocation3 + $0x18] sm:$0xff]
    %v2258 = vld [vmem:[#allocation3 + $0x20] sm:$0xff]
    %v2259 = vld [vmem:[#allocation3 + $0x28] sm:$0xff]
    %v2260 = vld [vmem:[#allocation3 + $0x30] sm:$0xff]
    %v2261 = vld [vmem:[#allocation3 + $0x38] sm:$0xff]
    %v2262 = vtanh.pop %v2254
    %v2263 = vtanh.pop %v2255
    %v2264 = vtanh.pop %v2256
    %v2265 = vtanh.pop %v2257
    %v2266 = vtanh.pop %v2258
    %v2267 = vtanh.pop %v2259
    %v2268 = vtanh.pop %v2260
    %v2269 = vtanh.pop %v2261
    %v2270 = vld [vmem:[%s3] sm:$0xff]
    %v2271 = vld [vmem:[%s3 + $0x8] sm:$0xff]
    %v2272 = vld [vmem:[%s3 + $0x10] sm:$0xff]
    %v2273 = vld [vmem:[%s3 + $0x18] sm:$0xff]
    %v2274 = vld [vmem:[%s3 + $0x20] sm:$0xff]
    %v2275 = vld [vmem:[%s3 + $0x28] sm:$0xff]
    %v2276 = vld [vmem:[%s3 + $0x30] sm:$0xff]
    %v2277 = vld [vmem:[%s3 + $0x38] sm:$0xff]
    %v2278 = vld [vmem:[%s3 + $0x40] sm:$0xff]
    %v2279 = vld [vmem:[%s3 + $0x48] sm:$0xff]
    %v2280 = vld [vmem:[%s3 + $0x50] sm:$0xff]
    %v2281 = vld [vmem:[%s3 + $0x58] sm:$0xff]
    %v2282 = vld [vmem:[%s3 + $0x60] sm:$0xff]
    %v2283 = vld [vmem:[%s3 + $0x68] sm:$0xff]
    %v2284 = vld [vmem:[%s3 + $0x70] sm:$0xff]
    %v2285 = vld [vmem:[%s3 + $0x78] sm:$0xff]
    %v2286 = vld [vmem:[%s3 + $0x80] sm:$0x1]
    %v2287 = vlaneseq
    %v2288 = vshrl.u32 %v2287, 7
    %v2289 = vsub.s32 0, %v2288
    %v2290 = vrot.slane %v2286, %v2289
    %2291 = vmatprep.subr.mxu0 0.0
    %2292 = vmatpush1.msra.mxu0 %v2285
    %2293 = vmatprep.subr.mxu0 0.0
    %2294 = vmatpush1.msra.mxu0 %v2284
    %2295 = vmatprep.subr.mxu0 0.0
    %2296 = vmatpush1.msra.mxu0 %v2283
    %2297 = vmatprep.subr.mxu0 0.0
    %2298 = vmatpush1.msra.mxu0 %v2282
    %2299 = vmatprep.subr.mxu0 0.0
    %2300 = vmatpush1.msra.mxu0 %v2281
    %2301 = vmatprep.subr.mxu0 0.0
    %2302 = vmatpush1.msra.mxu0 %v2280
    %2303 = vmatprep.subr.mxu0 0.0
    %2304 = vmatpush1.msra.mxu0 %v2279
    %2305 = vmatprep.subr.mxu0 0.0
    %2306 = vmatpush1.msra.mxu0 %v2278
    %2307 = vmatprep.subr.mxu0 0.0
    %2308 = vmatpush1.msra.mxu0 %v2277
    %2309 = vmatprep.subr.mxu0 0.0
    %2310 = vmatpush1.msra.mxu0 %v2276
    %2311 = vmatprep.subr.mxu0 0.0
    %2312 = vmatpush1.msra.mxu0 %v2275
    %2313 = vmatprep.subr.mxu0 0.0
    %2314 = vmatpush1.msra.mxu0 %v2274
    %2315 = vmatprep.subr.mxu0 0.0
    %2316 = vmatpush1.msra.mxu0 %v2273
    %2317 = vmatprep.subr.mxu0 0.0
    %2318 = vmatpush1.msra.mxu0 %v2272
    %2319 = vmatprep.subr.mxu0 0.0
    %2320 = vmatpush1.msra.mxu0 %v2271
    %2321 = vmatprep.subr.mxu0 0.0
    %2322 = vmatpush1.msra.mxu0 %v2270
    %2323 = vmatprep.subr.mxu0 0.0
    %2324 = vmatpush2.msra.mxu0 0.0
    %2325 = vmatprep.subr.mxu0 0.0
    %2326 = vmatpush2.msra.mxu0 0.0
    %2327 = vmatprep.subr.mxu0 0.0
    %2328 = vmatpush2.msra.mxu0 0.0
    %2329 = vmatprep.subr.mxu0 0.0
    %2330 = vmatpush2.msra.mxu0 0.0
    %2331 = vmatprep.subr.mxu0 0.0
    %2332 = vmatpush2.msra.mxu0 0.0
    %2333 = vmatprep.subr.mxu0 0.0
    %2334 = vmatpush2.msra.mxu0 0.0
    %2335 = vmatprep.subr.mxu0 0.0
    %2336 = vmatpush2.msra.mxu0 0.0
    %2337 = vmatprep.subr.mxu0 0.0
    %2338 = vmatpush2.msra.mxu0 0.0
    %2339 = vmatprep.subr.mxu0 0.0
    %2340 = vmatpush2.msra.mxu0 0.0
    %2341 = vmatprep.subr.mxu0 0.0
    %2342 = vmatpush2.msra.mxu0 0.0
    %2343 = vmatprep.subr.mxu0 0.0
    %2344 = vmatpush2.msra.mxu0 0.0
    %2345 = vmatprep.subr.mxu0 0.0
    %2346 = vmatpush2.msra.mxu0 0.0
    %2347 = vmatprep.subr.mxu0 0.0
    %2348 = vmatpush2.msra.mxu0 0.0
    %2349 = vmatprep.subr.mxu0 0.0
    %2350 = vmatpush2.msra.mxu0 0.0
    %2351 = vmatprep.subr.mxu0 0.0
    %2352 = vmatpush2.msra.mxu0 0.0
    %2353 = vmatprep.subr.mxu0 0.0
    %2354 = vmatpush2.msra.mxu0 0.0
    %2355 = vmatprep.mubr.f32.mxu0 0.0
    %2356 = vmatmul.mubr.f32.gmra.mxu0 %v2262
    %v2357 = vpop.f32.mrf.mxu0
    %v2358 = vadd.f32 %v2290, %v2357
    %v2359 = vpop.f32.mrf.mxu0
    %2360 = vmatprep.mubr.f32.mxu0 0.0
    %2361 = vmatmul.mubr.f32.gmra.mxu0 %v2263
    %v2362 = vpop.f32.mrf.mxu0
    %v2363 = vadd.f32 %v2290, %v2362
    %v2364 = vpop.f32.mrf.mxu0
    %2365 = vmatprep.mubr.f32.mxu0 0.0
    %2366 = vmatmul.mubr.f32.gmra.mxu0 %v2264
    %v2367 = vpop.f32.mrf.mxu0
    %v2368 = vadd.f32 %v2290, %v2367
    %v2369 = vpop.f32.mrf.mxu0
    %2370 = vmatprep.mubr.f32.mxu0 0.0
    %2371 = vmatmul.mubr.f32.gmra.mxu0 %v2265
    %v2372 = vpop.f32.mrf.mxu0
    %v2373 = vadd.f32 %v2290, %v2372
    %v2374 = vpop.f32.mrf.mxu0
    %2375 = vmatprep.mubr.f32.mxu0 0.0
    %2376 = vmatmul.mubr.f32.gmra.mxu0 %v2266
    %v2377 = vpop.f32.mrf.mxu0
    %v2378 = vadd.f32 %v2290, %v2377
    %v2379 = vpop.f32.mrf.mxu0
    %2380 = vmatprep.mubr.f32.mxu0 0.0
    %2381 = vmatmul.mubr.f32.gmra.mxu0 %v2267
    %v2382 = vpop.f32.mrf.mxu0
    %v2383 = vadd.f32 %v2290, %v2382
    %v2384 = vpop.f32.mrf.mxu0
    %2385 = vmatprep.mubr.f32.mxu0 0.0
    %2386 = vmatmul.mubr.f32.gmra.mxu0 %v2268
    %v2387 = vpop.f32.mrf.mxu0
    %v2388 = vadd.f32 %v2290, %v2387
    %v2389 = vpop.f32.mrf.mxu0
    %2390 = vmatprep.mubr.f32.mxu0 0.0
    %2391 = vmatmul.mubr.f32.gmra.mxu0 %v2269
    %v2392 = vpop.f32.mrf.mxu0
    %v2393 = vadd.f32 %v2290, %v2392
    %v2394 = vpop.f32.mrf.mxu0
    %2395 = vdwg.mxu0
    %v2396 = vld [vmem:[%s0] sm:$0xff]
    %v2397 = vld [vmem:[%s0 + $0x8] sm:$0xff]
    %v2398 = vld [vmem:[%s0 + $0x10] sm:$0xff]
    %v2399 = vld [vmem:[%s0 + $0x18] sm:$0xff]
    %v2400 = vld [vmem:[%s0 + $0x20] sm:$0xff]
    %v2401 = vld [vmem:[%s0 + $0x28] sm:$0xff]
    %v2402 = vld [vmem:[%s0 + $0x30] sm:$0xff]
    %v2403 = vld [vmem:[%s0 + $0x38] sm:$0xff]
    %2412 = vrot.lane.b32.xlu0 %v2396, 126
    %v2413 = vpop.permute.xlu0 %2412
    %2414 = vrot.lane.b32.xlu0 %v2397, 126
    %v2415 = vpop.permute.xlu0 %2414
    %2416 = vrot.lane.b32.xlu0 %v2398, 126
    %v2417 = vpop.permute.xlu0 %2416
    %2418 = vrot.lane.b32.xlu0 %v2399, 126
    %v2419 = vpop.permute.xlu0 %2418
    %2420 = vrot.lane.b32.xlu0 %v2400, 126
    %v2421 = vpop.permute.xlu0 %2420
    %2422 = vrot.lane.b32.xlu0 %v2401, 126
    %v2423 = vpop.permute.xlu0 %2422
    %2424 = vrot.lane.b32.xlu0 %v2402, 126
    %v2425 = vpop.permute.xlu0 %2424
    %2426 = vrot.lane.b32.xlu0 %v2403, 126
    %v2427 = vpop.permute.xlu0 %2426
    %v2436 = vmul.f32 %v2358, %v2413
    %v2437 = vmul.f32 %v2363, %v2415
    %v2438 = vmul.f32 %v2368, %v2417
    %v2439 = vmul.f32 %v2373, %v2419
    %v2440 = vmul.f32 %v2378, %v2421
    %v2441 = vmul.f32 %v2383, %v2423
    %v2442 = vmul.f32 %v2388, %v2425
    %v2443 = vmul.f32 %v2393, %v2427
    %vm2444 = vcmask 23552
    %v2445 = vsel %vm2444, %v2436, 0.0
    %2446 = vadd.xlane.f32.xlu0 %v2445
    %v2447 = vpop.xlane.xlu0 %2446
    %v2448 = vsel %vm2444, %v2437, 0.0
    %2449 = vadd.xlane.f32.xlu0 %v2448
    %v2450 = vpop.xlane.xlu0 %2449
    %v2451 = vsel %vm2444, %v2438, 0.0
    %2452 = vadd.xlane.f32.xlu0 %v2451
    %v2453 = vpop.xlane.xlu0 %2452
    %v2454 = vsel %vm2444, %v2439, 0.0
    %2455 = vadd.xlane.f32.xlu0 %v2454
    %v2456 = vpop.xlane.xlu0 %2455
    %v2457 = vsel %vm2444, %v2440, 0.0
    %2458 = vadd.xlane.f32.xlu0 %v2457
    %v2459 = vpop.xlane.xlu0 %2458
    %v2460 = vsel %vm2444, %v2441, 0.0
    %2461 = vadd.xlane.f32.xlu0 %v2460
    %v2462 = vpop.xlane.xlu0 %2461
    %v2463 = vsel %vm2444, %v2442, 0.0
    %2464 = vadd.xlane.f32.xlu0 %v2463
    %v2465 = vpop.xlane.xlu0 %2464
    %v2466 = vsel %vm2444, %v2443, 0.0
    %2467 = vadd.xlane.f32.xlu0 %v2466
    %v2468 = vpop.xlane.xlu0 %2467
    %vm2469 = vcmask 7168
    %2470 = vst.msk [vmem:[%s4] sm:$0xff] %vm2469, %v2447
    %2471 = vst.msk [vmem:[%s4 + $0x8] sm:$0xff] %vm2469, %v2450
    %2472 = vst.msk [vmem:[%s4 + $0x10] sm:$0xff] %vm2469, %v2453
    %2473 = vst.msk [vmem:[%s4 + $0x18] sm:$0xff] %vm2469, %v2456
    %2474 = vst.msk [vmem:[%s4 + $0x20] sm:$0xff] %vm2469, %v2459
    %2475 = vst.msk [vmem:[%s4 + $0x28] sm:$0xff] %vm2469, %v2462
    %2476 = vst.msk [vmem:[%s4 + $0x30] sm:$0xff] %vm2469, %v2465
    %2477 = vst.msk [vmem:[%s4 + $0x38] sm:$0xff] %vm2469, %v2468
    // Predicated region
    $region22: #{decoder_lstm_forward.1} parent=1 // pred_check
      _
    $region23: #{decoder_lstm_forward.1} parent=1 // pred_check_branch
      %2479 = sbr.rel (0) target = $region25
    $region24: #{decoder_lstm_forward.1} parent=1 // pred_region
      _
    $region25: #{decoder_lstm_forward.1} parent=1 // pred_fallthru
      _
    // Predicated region
    $region26: #{decoder_lstm_forward.1} parent=1 // pred_check
      _
    $region27: #{decoder_lstm_forward.1} parent=1 // pred_check_branch
      %2481 = sbr.rel (0) target = $region29
    $region28: #{decoder_lstm_forward.1} parent=1 // pred_region
      _
    $region29: #{decoder_lstm_forward.1} parent=1 // pred_fallthru
      _
    %2482 = vsyncpa [#allocation5], 1

</llo_original>
